<compile_context>
chip_gen: v7x
topology: tpu7x:2x2x1
jax: 0.10.0
libtpu: 0.0.40
codegen_flags: <defaults>
</compile_context>

<pallas_src>
import functools

import jax
import jax.numpy as jnp
from jax.experimental import pallas as pl
from jax.experimental.pallas import tpu as pltpu


def _round_up(x, m):
    return ((x + m - 1) // m) * m


def decoder_gru_kernel(tok_ref, h0_ref, emb_ref, wih_ref, bih_ref, whh_ref,
                       bhh_ref, wlin_ref, blin_ref,
                       logp_ref, hout_ref,
                       xbuf_ref, seq_ref):
    """In-kernel embedding gather + relu + GRU recurrence + linear + log_softmax."""
    TB = tok_ref.shape[0]            # T * B
    B, Hp = h0_ref.shape
    T = TB // B

    # ---- in-kernel embedding gather (tokens in SMEM, table in VMEM) ----
    for i in range(TB):
        xbuf_ref[i:i + 1, :] = emb_ref[tok_ref[i]]            # (1, Ep) row, static dest

    # ---- hoisted input projection: relu(x) @ W_ih for ALL steps at once ----
    x = jnp.maximum(xbuf_ref[...], 0.0)                       # (T*B, Ep)
    gx = jnp.dot(x, wih_ref[...],
                 preferred_element_type=jnp.float32) + bih_ref[...]   # (T*B, 3*Hp)

    # ---- loop-invariant loads hoisted out of the recurrence ----
    whh = whh_ref[...]                                        # (Hp, 3*Hp)
    bhh = bhh_ref[...]                                        # (1, 3*Hp)

    # ---- fully-unrolled GRU recurrence: one fused (B,Hp)@(Hp,3Hp) matmul per step ----
    h = h0_ref[...]                                           # (B, Hp)
    for t in range(T):
        gxt = gx[t * B:(t + 1) * B, :]                        # (B, 3*Hp) static slice
        gh = jnp.dot(h, whh, preferred_element_type=jnp.float32) + bhh
        r = jax.nn.sigmoid(gxt[:, :Hp] + gh[:, :Hp])
        z = jax.nn.sigmoid(gxt[:, Hp:2 * Hp] + gh[:, Hp:2 * Hp])
        n = jnp.tanh(gxt[:, 2 * Hp:] + r * gh[:, 2 * Hp:])    # b_hn inside r-gate (PyTorch)
        h = (1.0 - z) * n + z * h
        seq_ref[t:t + 1, :] = h[0:1, :]                       # batch-0 row, static address
    hout_ref[...] = h

    # ---- epilogue: linear + log_softmax over the batch-0 sequence outputs ----
    logits = jnp.dot(seq_ref[...], wlin_ref[...],
                     preferred_element_type=jnp.float32) + blin_ref[...]   # (T, Vp)
    m = jnp.max(logits, axis=-1, keepdims=True)
    lse = m + jnp.log(jnp.sum(jnp.exp(logits - m), axis=-1, keepdims=True))
    logp_ref[...] = logits - lse


def prepare_params(params):
    """One-time re-layout: pad E/H/V to 128 lanes, stack gates (r,z,n) gate-major."""
    V, E = params["embed"].shape
    H = params["w_hh"].shape[-1]
    Ep, Hp, Vp = _round_up(E, 128), _round_up(H, 128), _round_up(V, 128)

    emb = jnp.zeros((V, 1, Ep), jnp.float32).at[:, 0, :E].set(params["embed"])
    wih = jnp.zeros((Ep, 3 * Hp), jnp.float32)
    whh = jnp.zeros((Hp, 3 * Hp), jnp.float32)
    bih = jnp.zeros((1, 3 * Hp), jnp.float32)
    bhh = jnp.zeros((1, 3 * Hp), jnp.float32)
    for g in range(3):
        wih = wih.at[:E, g * Hp:g * Hp + H].set(params["w_ih"][g])
        whh = whh.at[:H, g * Hp:g * Hp + H].set(params["w_hh"][g])
        bih = bih.at[:, g * Hp:g * Hp + H].set(params["b_ih"][g])
        bhh = bhh.at[:, g * Hp:g * Hp + H].set(params["b_hh"][g])
    wlin = jnp.zeros((Hp, Vp), jnp.float32).at[:H, :V].set(params["w_lin"])
    # pad vocab columns of the bias with -1e30 so log_softmax ignores them
    blin = jnp.full((1, Vp), -1e30, jnp.float32).at[:, :V].set(params["b_lin"])
    return dict(emb=emb, wih=wih, bih=bih, whh=whh, bhh=bhh, wlin=wlin, blin=blin,
                dims=(V, E, H, Ep, Hp, Vp))


def decoder_gru_forward(prep, tokens, hidden):
    """tokens: (B, T) int32, hidden: (1, B, H) f32 -> (logp (T, V), hidden (1, B, H))."""
    V, E, H, Ep, Hp, Vp = prep["dims"]
    B, T = tokens.shape
    tok_tm = jnp.transpose(tokens, (1, 0)).reshape(T * B).astype(jnp.int32)  # time-major
    h0 = jnp.zeros((B, Hp), jnp.float32).at[:, :H].set(hidden[0])

    vmem = pl.BlockSpec(memory_space=pltpu.MemorySpace.VMEM)
    smem = pl.BlockSpec(memory_space=pltpu.MemorySpace.SMEM)
    logp_p, h_p = pl.pallas_call(
        decoder_gru_kernel,
        out_shape=(jax.ShapeDtypeStruct((T, Vp), jnp.float32),
                   jax.ShapeDtypeStruct((B, Hp), jnp.float32)),
        in_specs=[smem] + [vmem] * 8,
        out_specs=(vmem, vmem),
        scratch_shapes=[pltpu.VMEM((T * B, Ep), jnp.float32),   # gathered embeddings
                        pltpu.VMEM((T, Hp), jnp.float32)],      # batch-0 GRU outputs
        compiler_params=pltpu.CompilerParams(vmem_limit_bytes=32 * 1024 * 1024),
    )(tok_tm, h0, prep["emb"], prep["wih"], prep["bih"], prep["whh"], prep["bhh"],
      prep["wlin"], prep["blin"])
    return logp_p[:, :V], h_p[:, :H][None]                     # hidden back to (1, B, H)


def init_params(key, vocab_size, embed_size, hidden_size):
    ks = jax.random.split(key, 7)
    bound = 1.0 / float(hidden_size) ** 0.5
    return dict(
        embed=jax.random.normal(ks[0], (vocab_size, embed_size), jnp.float32),
        w_ih=jax.random.uniform(ks[1], (3, embed_size, hidden_size), jnp.float32, -bound, bound),
        w_hh=jax.random.uniform(ks[2], (3, hidden_size, hidden_size), jnp.float32, -bound, bound),
        b_ih=jax.random.uniform(ks[3], (3, 1, hidden_size), jnp.float32, -bound, bound),
        b_hh=jax.random.uniform(ks[4], (3, 1, hidden_size), jnp.float32, -bound, bound),
        w_lin=jax.random.uniform(ks[5], (hidden_size, vocab_size), jnp.float32, -bound, bound),
        b_lin=jax.random.uniform(ks[6], (1, vocab_size), jnp.float32, -bound, bound),
    )


def reference_forward(params, tokens, hidden):
    """Pure-JAX reference mirroring the torch module (for correctness check)."""
    emb = jnp.maximum(params["embed"][tokens], 0.0)      # (B, T, E)
    h = hidden[0]                                        # (B, H)
    outs = []
    for t in range(emb.shape[1]):
        xt = emb[:, t, :]
        r = jax.nn.sigmoid(xt @ params["w_ih"][0] + params["b_ih"][0]
                           + h @ params["w_hh"][0] + params["b_hh"][0])
        z = jax.nn.sigmoid(xt @ params["w_ih"][1] + params["b_ih"][1]
                           + h @ params["w_hh"][1] + params["b_hh"][1])
        n = jnp.tanh(xt @ params["w_ih"][2] + params["b_ih"][2]
                     + r * (h @ params["w_hh"][2] + params["b_hh"][2]))
        h = (1.0 - z) * n + z * h
        outs.append(h[0])
    seq = jnp.stack(outs)                                # (T, H)  == output[0]
    logits = seq @ params["w_lin"] + params["b_lin"]     # (T, V)
    return jax.nn.log_softmax(logits, axis=-1), h[None]


if __name__ == "__main__":
    vocab_size, embed_size, hidden_size = 32, 16, 32
    B, T = 1, 8                                          # inithidden() implies batch 1

    key = jax.random.PRNGKey(0)
    kp, kt = jax.random.split(key)
    params = init_params(kp, vocab_size, embed_size, hidden_size)
    tokens = jax.random.randint(kt, (B, T), 0, vocab_size, dtype=jnp.int32)
    hidden = jnp.zeros((1, B, hidden_size), jnp.float32)

    prepared = prepare_params(params)
    fwd = jax.jit(functools.partial(decoder_gru_forward, prepared))
    logp, h_out = fwd(tokens, hidden)
    jax.block_until_ready((logp, h_out))

    ref_logp, ref_h = reference_forward(params, tokens, hidden)
    assert logp.shape == (T, vocab_size) and h_out.shape == (1, B, hidden_size)
    assert jnp.allclose(logp, ref_logp, atol=5e-4, rtol=5e-4)
    assert jnp.allclose(h_out, ref_h, atol=5e-4, rtol=5e-4)
    print("KERNEL_OK")
</pallas_src>

<mosaic_0001>
module attributes {stable_mosaic.version = 11 : i64} {
  func.func @decoder_gru_kernel(%arg0: memref<8xi32, #tpu.memory_space<smem>>, %arg1: memref<1x128xf32, #tpu.memory_space<vmem>>, %arg2: memref<32x1x128xf32, #tpu.memory_space<vmem>>, %arg3: memref<128x384xf32, #tpu.memory_space<vmem>>, %arg4: memref<1x384xf32, #tpu.memory_space<vmem>>, %arg5: memref<128x384xf32, #tpu.memory_space<vmem>>, %arg6: memref<1x384xf32, #tpu.memory_space<vmem>>, %arg7: memref<128x128xf32, #tpu.memory_space<vmem>>, %arg8: memref<1x128xf32, #tpu.memory_space<vmem>>, %arg9: memref<8x128xf32, #tpu.memory_space<vmem>>, %arg10: memref<1x128xf32, #tpu.memory_space<vmem>>, %arg11: memref<8x128xf32, #tpu.memory_space<vmem>>, %arg12: memref<8x128xf32, #tpu.memory_space<vmem>>) attributes {dimension_semantics = [], scalar_prefetch = 0 : i64, scratch_operands = 2 : i64, tpu.core_type = #tpu.core_type<tc>} {
    %c0 = arith.constant 0 : index
    %0 = memref.load %arg0[%c0] : memref<8xi32, #tpu.memory_space<smem>>
    %1 = arith.index_cast %0 : i32 to index
    %c0_0 = arith.constant 0 : index
    %c0_1 = arith.constant 0 : index
    %2 = vector.load %arg2[%1, %c0_0, %c0_1] : memref<32x1x128xf32, #tpu.memory_space<vmem>>, vector<1x1x128xf32>
    %3 = vector.shape_cast %2 : vector<1x1x128xf32> to vector<1x128xf32>
    %c0_2 = arith.constant 0 : index
    %c0_3 = arith.constant 0 : index
    %4 = vector.load %arg11[%c0_2, %c0_3] : memref<8x128xf32, #tpu.memory_space<vmem>>, vector<1x128xf32>
    tpu.vector_store %arg11[%c0_2, %c0_3], %3 {strides = array<i32>} : memref<8x128xf32, #tpu.memory_space<vmem>>, vector<1x128xf32>,
    %c1 = arith.constant 1 : index
    %5 = memref.load %arg0[%c1] : memref<8xi32, #tpu.memory_space<smem>>
    %6 = arith.index_cast %5 : i32 to index
    %c0_4 = arith.constant 0 : index
    %c0_5 = arith.constant 0 : index
    %7 = vector.load %arg2[%6, %c0_4, %c0_5] : memref<32x1x128xf32, #tpu.memory_space<vmem>>, vector<1x1x128xf32>
    %8 = vector.shape_cast %7 : vector<1x1x128xf32> to vector<1x128xf32>
    %c1_6 = arith.constant 1 : index
    %c0_7 = arith.constant 0 : index
    %9 = vector.load %arg11[%c1_6, %c0_7] : memref<8x128xf32, #tpu.memory_space<vmem>>, vector<1x128xf32>
    tpu.vector_store %arg11[%c1_6, %c0_7], %8 {strides = array<i32>} : memref<8x128xf32, #tpu.memory_space<vmem>>, vector<1x128xf32>,
    %c2 = arith.constant 2 : index
    %10 = memref.load %arg0[%c2] : memref<8xi32, #tpu.memory_space<smem>>
    %11 = arith.index_cast %10 : i32 to index
    %c0_8 = arith.constant 0 : index
    %c0_9 = arith.constant 0 : index
    %12 = vector.load %arg2[%11, %c0_8, %c0_9] : memref<32x1x128xf32, #tpu.memory_space<vmem>>, vector<1x1x128xf32>
    %13 = vector.shape_cast %12 : vector<1x1x128xf32> to vector<1x128xf32>
    %c2_10 = arith.constant 2 : index
    %c0_11 = arith.constant 0 : index
    %14 = vector.load %arg11[%c2_10, %c0_11] : memref<8x128xf32, #tpu.memory_space<vmem>>, vector<1x128xf32>
    tpu.vector_store %arg11[%c2_10, %c0_11], %13 {strides = array<i32>} : memref<8x128xf32, #tpu.memory_space<vmem>>, vector<1x128xf32>,
    %c3 = arith.constant 3 : index
    %15 = memref.load %arg0[%c3] : memref<8xi32, #tpu.memory_space<smem>>
    %16 = arith.index_cast %15 : i32 to index
    %c0_12 = arith.constant 0 : index
    %c0_13 = arith.constant 0 : index
    %17 = vector.load %arg2[%16, %c0_12, %c0_13] : memref<32x1x128xf32, #tpu.memory_space<vmem>>, vector<1x1x128xf32>
    %18 = vector.shape_cast %17 : vector<1x1x128xf32> to vector<1x128xf32>
    %c3_14 = arith.constant 3 : index
    %c0_15 = arith.constant 0 : index
    %19 = vector.load %arg11[%c3_14, %c0_15] : memref<8x128xf32, #tpu.memory_space<vmem>>, vector<1x128xf32>
    tpu.vector_store %arg11[%c3_14, %c0_15], %18 {strides = array<i32>} : memref<8x128xf32, #tpu.memory_space<vmem>>, vector<1x128xf32>,
    %c4 = arith.constant 4 : index
    %20 = memref.load %arg0[%c4] : memref<8xi32, #tpu.memory_space<smem>>
    %21 = arith.index_cast %20 : i32 to index
    %c0_16 = arith.constant 0 : index
    %c0_17 = arith.constant 0 : index
    %22 = vector.load %arg2[%21, %c0_16, %c0_17] : memref<32x1x128xf32, #tpu.memory_space<vmem>>, vector<1x1x128xf32>
    %23 = vector.shape_cast %22 : vector<1x1x128xf32> to vector<1x128xf32>
    %c4_18 = arith.constant 4 : index
    %c0_19 = arith.constant 0 : index
    %24 = vector.load %arg11[%c4_18, %c0_19] : memref<8x128xf32, #tpu.memory_space<vmem>>, vector<1x128xf32>
    tpu.vector_store %arg11[%c4_18, %c0_19], %23 {strides = array<i32>} : memref<8x128xf32, #tpu.memory_space<vmem>>, vector<1x128xf32>,
    %c5 = arith.constant 5 : index
    %25 = memref.load %arg0[%c5] : memref<8xi32, #tpu.memory_space<smem>>
    %26 = arith.index_cast %25 : i32 to index
    %c0_20 = arith.constant 0 : index
    %c0_21 = arith.constant 0 : index
    %27 = vector.load %arg2[%26, %c0_20, %c0_21] : memref<32x1x128xf32, #tpu.memory_space<vmem>>, vector<1x1x128xf32>
    %28 = vector.shape_cast %27 : vector<1x1x128xf32> to vector<1x128xf32>
    %c5_22 = arith.constant 5 : index
    %c0_23 = arith.constant 0 : index
    %29 = vector.load %arg11[%c5_22, %c0_23] : memref<8x128xf32, #tpu.memory_space<vmem>>, vector<1x128xf32>
    tpu.vector_store %arg11[%c5_22, %c0_23], %28 {strides = array<i32>} : memref<8x128xf32, #tpu.memory_space<vmem>>, vector<1x128xf32>,
    %c6 = arith.constant 6 : index
    %30 = memref.load %arg0[%c6] : memref<8xi32, #tpu.memory_space<smem>>
    %31 = arith.index_cast %30 : i32 to index
    %c0_24 = arith.constant 0 : index
    %c0_25 = arith.constant 0 : index
    %32 = vector.load %arg2[%31, %c0_24, %c0_25] : memref<32x1x128xf32, #tpu.memory_space<vmem>>, vector<1x1x128xf32>
    %33 = vector.shape_cast %32 : vector<1x1x128xf32> to vector<1x128xf32>
    %c6_26 = arith.constant 6 : index
    %c0_27 = arith.constant 0 : index
    %34 = vector.load %arg11[%c6_26, %c0_27] : memref<8x128xf32, #tpu.memory_space<vmem>>, vector<1x128xf32>
    tpu.vector_store %arg11[%c6_26, %c0_27], %33 {strides = array<i32>} : memref<8x128xf32, #tpu.memory_space<vmem>>, vector<1x128xf32>,
    %c7 = arith.constant 7 : index
    %35 = memref.load %arg0[%c7] : memref<8xi32, #tpu.memory_space<smem>>
    %36 = arith.index_cast %35 : i32 to index
    %c0_28 = arith.constant 0 : index
    %c0_29 = arith.constant 0 : index
    %37 = vector.load %arg2[%36, %c0_28, %c0_29] : memref<32x1x128xf32, #tpu.memory_space<vmem>>, vector<1x1x128xf32>
    %38 = vector.shape_cast %37 : vector<1x1x128xf32> to vector<1x128xf32>
    %c7_30 = arith.constant 7 : index
    %c0_31 = arith.constant 0 : index
    %39 = vector.load %arg11[%c7_30, %c0_31] : memref<8x128xf32, #tpu.memory_space<vmem>>, vector<1x128xf32>
    tpu.vector_store %arg11[%c7_30, %c0_31], %38 {strides = array<i32>} : memref<8x128xf32, #tpu.memory_space<vmem>>, vector<1x128xf32>,
    %c0_32 = arith.constant 0 : index
    %c0_33 = arith.constant 0 : index
    %40 = vector.load %arg11[%c0_32, %c0_33] : memref<8x128xf32, #tpu.memory_space<vmem>>, vector<8x128xf32>
    %cst = arith.constant 0.000000e+00 : f32
    %41 = vector.broadcast %cst : f32 to vector<8x128xf32>
    %42 = arith.maximumf %40, %41 : vector<8x128xf32>
    %c0_34 = arith.constant 0 : index
    %c0_35 = arith.constant 0 : index
    %43 = vector.load %arg3[%c0_34, %c0_35] : memref<128x384xf32, #tpu.memory_space<vmem>>, vector<128x384xf32>
    %cst_36 = arith.constant dense<0.000000e+00> : vector<8x384xf32>
    %44 = tpu.matmul %42, %43, %cst_36 {dimension_numbers = #tpu.dot_dimension_numbers<[1], [0], [0], [1], [0, 0, 1, 1], [], []>} : vector<8x128xf32>, vector<128x384xf32>, vector<8x384xf32> -> vector<8x384xf32>
    %c0_37 = arith.constant 0 : index
    %c0_38 = arith.constant 0 : index
    %45 = vector.load %arg4[%c0_37, %c0_38] : memref<1x384xf32, #tpu.memory_space<vmem>>, vector<1x384xf32>
    %46 = vector.broadcast %45 : vector<1x384xf32> to vector<8x384xf32>
    %47 = arith.addf %44, %46 : vector<8x384xf32>
    %c0_39 = arith.constant 0 : index
    %c0_40 = arith.constant 0 : index
    %48 = vector.load %arg5[%c0_39, %c0_40] : memref<128x384xf32, #tpu.memory_space<vmem>>, vector<128x384xf32>
    %c0_41 = arith.constant 0 : index
    %c0_42 = arith.constant 0 : index
    %49 = vector.load %arg6[%c0_41, %c0_42] : memref<1x384xf32, #tpu.memory_space<vmem>>, vector<1x384xf32>
    %c0_43 = arith.constant 0 : index
    %c0_44 = arith.constant 0 : index
    %50 = vector.load %arg1[%c0_43, %c0_44] : memref<1x128xf32, #tpu.memory_space<vmem>>, vector<1x128xf32>
    %51 = vector.extract_strided_slice %47 {offsets = [0, 0], sizes = [1, 384], strides = [1, 1]} : vector<8x384xf32> to vector<1x384xf32>
    %cst_45 = arith.constant dense<0.000000e+00> : vector<1x384xf32>
    %52 = tpu.matmul %50, %48, %cst_45 {dimension_numbers = #tpu.dot_dimension_numbers<[1], [0], [0], [1], [0, 0, 1, 1], [], []>} : vector<1x128xf32>, vector<128x384xf32>, vector<1x384xf32> -> vector<1x384xf32>
    %53 = arith.addf %52, %49 : vector<1x384xf32>
    %54 = vector.extract_strided_slice %51 {offsets = [0, 0], sizes = [1, 128], strides = [1, 1]} : vector<1x384xf32> to vector<1x128xf32>
    %55 = vector.extract_strided_slice %53 {offsets = [0, 0], sizes = [1, 128], strides = [1, 1]} : vector<1x384xf32> to vector<1x128xf32>
    %56 = arith.addf %54, %55 : vector<1x128xf32>
    %57 = arith.negf %56 : vector<1x128xf32>
    %58 = math.exp %57 : vector<1x128xf32>
    %cst_46 = arith.constant 1.000000e+00 : f32
    %59 = vector.broadcast %cst_46 : f32 to vector<1x128xf32>
    %60 = arith.addf %59, %58 : vector<1x128xf32>
    %61 = arith.divf %59, %60 : vector<1x128xf32>
    %62 = vector.extract_strided_slice %51 {offsets = [0, 128], sizes = [1, 128], strides = [1, 1]} : vector<1x384xf32> to vector<1x128xf32>
    %63 = vector.extract_strided_slice %53 {offsets = [0, 128], sizes = [1, 128], strides = [1, 1]} : vector<1x384xf32> to vector<1x128xf32>
    %64 = arith.addf %62, %63 : vector<1x128xf32>
    %65 = arith.negf %64 : vector<1x128xf32>
    %66 = math.exp %65 : vector<1x128xf32>
    %cst_47 = arith.constant 1.000000e+00 : f32
    %67 = vector.broadcast %cst_47 : f32 to vector<1x128xf32>
    %68 = arith.addf %67, %66 : vector<1x128xf32>
    %69 = arith.divf %67, %68 : vector<1x128xf32>
    %70 = vector.extract_strided_slice %51 {offsets = [0, 256], sizes = [1, 128], strides = [1, 1]} : vector<1x384xf32> to vector<1x128xf32>
    %71 = vector.extract_strided_slice %53 {offsets = [0, 256], sizes = [1, 128], strides = [1, 1]} : vector<1x384xf32> to vector<1x128xf32>
    %72 = arith.mulf %61, %71 : vector<1x128xf32>
    %73 = arith.addf %70, %72 : vector<1x128xf32>
    %74 = math.tanh %73 : vector<1x128xf32>
    %cst_48 = arith.constant 1.000000e+00 : f32
    %75 = vector.broadcast %cst_48 : f32 to vector<1x128xf32>
    %76 = arith.subf %75, %69 : vector<1x128xf32>
    %77 = arith.mulf %76, %74 : vector<1x128xf32>
    %78 = arith.mulf %69, %50 : vector<1x128xf32>
    %79 = arith.addf %77, %78 : vector<1x128xf32>
    %c0_49 = arith.constant 0 : index
    %c0_50 = arith.constant 0 : index
    %80 = vector.load %arg12[%c0_49, %c0_50] : memref<8x128xf32, #tpu.memory_space<vmem>>, vector<1x128xf32>
    tpu.vector_store %arg12[%c0_49, %c0_50], %79 {strides = array<i32>} : memref<8x128xf32, #tpu.memory_space<vmem>>, vector<1x128xf32>,
    %81 = vector.extract_strided_slice %47 {offsets = [1, 0], sizes = [1, 384], strides = [1, 1]} : vector<8x384xf32> to vector<1x384xf32>
    %cst_51 = arith.constant dense<0.000000e+00> : vector<1x384xf32>
    %82 = tpu.matmul %79, %48, %cst_51 {dimension_numbers = #tpu.dot_dimension_numbers<[1], [0], [0], [1], [0, 0, 1, 1], [], []>} : vector<1x128xf32>, vector<128x384xf32>, vector<1x384xf32> -> vector<1x384xf32>
    %83 = arith.addf %82, %49 : vector<1x384xf32>
    %84 = vector.extract_strided_slice %81 {offsets = [0, 0], sizes = [1, 128], strides = [1, 1]} : vector<1x384xf32> to vector<1x128xf32>
    %85 = vector.extract_strided_slice %83 {offsets = [0, 0], sizes = [1, 128], strides = [1, 1]} : vector<1x384xf32> to vector<1x128xf32>
    %86 = arith.addf %84, %85 : vector<1x128xf32>
    %87 = arith.negf %86 : vector<1x128xf32>
    %88 = math.exp %87 : vector<1x128xf32>
    %cst_52 = arith.constant 1.000000e+00 : f32
    %89 = vector.broadcast %cst_52 : f32 to vector<1x128xf32>
    %90 = arith.addf %89, %88 : vector<1x128xf32>
    %91 = arith.divf %89, %90 : vector<1x128xf32>
    %92 = vector.extract_strided_slice %81 {offsets = [0, 128], sizes = [1, 128], strides = [1, 1]} : vector<1x384xf32> to vector<1x128xf32>
    %93 = vector.extract_strided_slice %83 {offsets = [0, 128], sizes = [1, 128], strides = [1, 1]} : vector<1x384xf32> to vector<1x128xf32>
    %94 = arith.addf %92, %93 : vector<1x128xf32>
    %95 = arith.negf %94 : vector<1x128xf32>
    %96 = math.exp %95 : vector<1x128xf32>
    %cst_53 = arith.constant 1.000000e+00 : f32
    %97 = vector.broadcast %cst_53 : f32 to vector<1x128xf32>
    %98 = arith.addf %97, %96 : vector<1x128xf32>
    %99 = arith.divf %97, %98 : vector<1x128xf32>
    %100 = vector.extract_strided_slice %81 {offsets = [0, 256], sizes = [1, 128], strides = [1, 1]} : vector<1x384xf32> to vector<1x128xf32>
    %101 = vector.extract_strided_slice %83 {offsets = [0, 256], sizes = [1, 128], strides = [1, 1]} : vector<1x384xf32> to vector<1x128xf32>
    %102 = arith.mulf %91, %101 : vector<1x128xf32>
    %103 = arith.addf %100, %102 : vector<1x128xf32>
    %104 = math.tanh %103 : vector<1x128xf32>
    %cst_54 = arith.constant 1.000000e+00 : f32
    %105 = vector.broadcast %cst_54 : f32 to vector<1x128xf32>
    %106 = arith.subf %105, %99 : vector<1x128xf32>
    %107 = arith.mulf %106, %104 : vector<1x128xf32>
    %108 = arith.mulf %99, %79 : vector<1x128xf32>
    %109 = arith.addf %107, %108 : vector<1x128xf32>
    %c1_55 = arith.constant 1 : index
    %c0_56 = arith.constant 0 : index
    %110 = vector.load %arg12[%c1_55, %c0_56] : memref<8x128xf32, #tpu.memory_space<vmem>>, vector<1x128xf32>
    tpu.vector_store %arg12[%c1_55, %c0_56], %109 {strides = array<i32>} : memref<8x128xf32, #tpu.memory_space<vmem>>, vector<1x128xf32>,
    %111 = vector.extract_strided_slice %47 {offsets = [2, 0], sizes = [1, 384], strides = [1, 1]} : vector<8x384xf32> to vector<1x384xf32>
    %cst_57 = arith.constant dense<0.000000e+00> : vector<1x384xf32>
    %112 = tpu.matmul %109, %48, %cst_57 {dimension_numbers = #tpu.dot_dimension_numbers<[1], [0], [0], [1], [0, 0, 1, 1], [], []>} : vector<1x128xf32>, vector<128x384xf32>, vector<1x384xf32> -> vector<1x384xf32>
    %113 = arith.addf %112, %49 : vector<1x384xf32>
    %114 = vector.extract_strided_slice %111 {offsets = [0, 0], sizes = [1, 128], strides = [1, 1]} : vector<1x384xf32> to vector<1x128xf32>
    %115 = vector.extract_strided_slice %113 {offsets = [0, 0], sizes = [1, 128], strides = [1, 1]} : vector<1x384xf32> to vector<1x128xf32>
    %116 = arith.addf %114, %115 : vector<1x128xf32>
    %117 = arith.negf %116 : vector<1x128xf32>
    %118 = math.exp %117 : vector<1x128xf32>
    %cst_58 = arith.constant 1.000000e+00 : f32
    %119 = vector.broadcast %cst_58 : f32 to vector<1x128xf32>
    %120 = arith.addf %119, %118 : vector<1x128xf32>
    %121 = arith.divf %119, %120 : vector<1x128xf32>
    %122 = vector.extract_strided_slice %111 {offsets = [0, 128], sizes = [1, 128], strides = [1, 1]} : vector<1x384xf32> to vector<1x128xf32>
    %123 = vector.extract_strided_slice %113 {offsets = [0, 128], sizes = [1, 128], strides = [1, 1]} : vector<1x384xf32> to vector<1x128xf32>
    %124 = arith.addf %122, %123 : vector<1x128xf32>
    %125 = arith.negf %124 : vector<1x128xf32>
    %126 = math.exp %125 : vector<1x128xf32>
    %cst_59 = arith.constant 1.000000e+00 : f32
    %127 = vector.broadcast %cst_59 : f32 to vector<1x128xf32>
    %128 = arith.addf %127, %126 : vector<1x128xf32>
    %129 = arith.divf %127, %128 : vector<1x128xf32>
    %130 = vector.extract_strided_slice %111 {offsets = [0, 256], sizes = [1, 128], strides = [1, 1]} : vector<1x384xf32> to vector<1x128xf32>
    %131 = vector.extract_strided_slice %113 {offsets = [0, 256], sizes = [1, 128], strides = [1, 1]} : vector<1x384xf32> to vector<1x128xf32>
    %132 = arith.mulf %121, %131 : vector<1x128xf32>
    %133 = arith.addf %130, %132 : vector<1x128xf32>
    %134 = math.tanh %133 : vector<1x128xf32>
    %cst_60 = arith.constant 1.000000e+00 : f32
    %135 = vector.broadcast %cst_60 : f32 to vector<1x128xf32>
    %136 = arith.subf %135, %129 : vector<1x128xf32>
    %137 = arith.mulf %136, %134 : vector<1x128xf32>
    %138 = arith.mulf %129, %109 : vector<1x128xf32>
    %139 = arith.addf %137, %138 : vector<1x128xf32>
    %c2_61 = arith.constant 2 : index
    %c0_62 = arith.constant 0 : index
    %140 = vector.load %arg12[%c2_61, %c0_62] : memref<8x128xf32, #tpu.memory_space<vmem>>, vector<1x128xf32>
    tpu.vector_store %arg12[%c2_61, %c0_62], %139 {strides = array<i32>} : memref<8x128xf32, #tpu.memory_space<vmem>>, vector<1x128xf32>,
    %141 = vector.extract_strided_slice %47 {offsets = [3, 0], sizes = [1, 384], strides = [1, 1]} : vector<8x384xf32> to vector<1x384xf32>
    %cst_63 = arith.constant dense<0.000000e+00> : vector<1x384xf32>
    %142 = tpu.matmul %139, %48, %cst_63 {dimension_numbers = #tpu.dot_dimension_numbers<[1], [0], [0], [1], [0, 0, 1, 1], [], []>} : vector<1x128xf32>, vector<128x384xf32>, vector<1x384xf32> -> vector<1x384xf32>
    %143 = arith.addf %142, %49 : vector<1x384xf32>
    %144 = vector.extract_strided_slice %141 {offsets = [0, 0], sizes = [1, 128], strides = [1, 1]} : vector<1x384xf32> to vector<1x128xf32>
    %145 = vector.extract_strided_slice %143 {offsets = [0, 0], sizes = [1, 128], strides = [1, 1]} : vector<1x384xf32> to vector<1x128xf32>
    %146 = arith.addf %144, %145 : vector<1x128xf32>
    %147 = arith.negf %146 : vector<1x128xf32>
    %148 = math.exp %147 : vector<1x128xf32>
    %cst_64 = arith.constant 1.000000e+00 : f32
    %149 = vector.broadcast %cst_64 : f32 to vector<1x128xf32>
    %150 = arith.addf %149, %148 : vector<1x128xf32>
    %151 = arith.divf %149, %150 : vector<1x128xf32>
    %152 = vector.extract_strided_slice %141 {offsets = [0, 128], sizes = [1, 128], strides = [1, 1]} : vector<1x384xf32> to vector<1x128xf32>
    %153 = vector.extract_strided_slice %143 {offsets = [0, 128], sizes = [1, 128], strides = [1, 1]} : vector<1x384xf32> to vector<1x128xf32>
    %154 = arith.addf %152, %153 : vector<1x128xf32>
    %155 = arith.negf %154 : vector<1x128xf32>
    %156 = math.exp %155 : vector<1x128xf32>
    %cst_65 = arith.constant 1.000000e+00 : f32
    %157 = vector.broadcast %cst_65 : f32 to vector<1x128xf32>
    %158 = arith.addf %157, %156 : vector<1x128xf32>
    %159 = arith.divf %157, %158 : vector<1x128xf32>
    %160 = vector.extract_strided_slice %141 {offsets = [0, 256], sizes = [1, 128], strides = [1, 1]} : vector<1x384xf32> to vector<1x128xf32>
    %161 = vector.extract_strided_slice %143 {offsets = [0, 256], sizes = [1, 128], strides = [1, 1]} : vector<1x384xf32> to vector<1x128xf32>
    %162 = arith.mulf %151, %161 : vector<1x128xf32>
    %163 = arith.addf %160, %162 : vector<1x128xf32>
    %164 = math.tanh %163 : vector<1x128xf32>
    %cst_66 = arith.constant 1.000000e+00 : f32
    %165 = vector.broadcast %cst_66 : f32 to vector<1x128xf32>
    %166 = arith.subf %165, %159 : vector<1x128xf32>
    %167 = arith.mulf %166, %164 : vector<1x128xf32>
    %168 = arith.mulf %159, %139 : vector<1x128xf32>
    %169 = arith.addf %167, %168 : vector<1x128xf32>
    %c3_67 = arith.constant 3 : index
    %c0_68 = arith.constant 0 : index
    %170 = vector.load %arg12[%c3_67, %c0_68] : memref<8x128xf32, #tpu.memory_space<vmem>>, vector<1x128xf32>
    tpu.vector_store %arg12[%c3_67, %c0_68], %169 {strides = array<i32>} : memref<8x128xf32, #tpu.memory_space<vmem>>, vector<1x128xf32>,
    %171 = vector.extract_strided_slice %47 {offsets = [4, 0], sizes = [1, 384], strides = [1, 1]} : vector<8x384xf32> to vector<1x384xf32>
    %cst_69 = arith.constant dense<0.000000e+00> : vector<1x384xf32>
    %172 = tpu.matmul %169, %48, %cst_69 {dimension_numbers = #tpu.dot_dimension_numbers<[1], [0], [0], [1], [0, 0, 1, 1], [], []>} : vector<1x128xf32>, vector<128x384xf32>, vector<1x384xf32> -> vector<1x384xf32>
    %173 = arith.addf %172, %49 : vector<1x384xf32>
    %174 = vector.extract_strided_slice %171 {offsets = [0, 0], sizes = [1, 128], strides = [1, 1]} : vector<1x384xf32> to vector<1x128xf32>
    %175 = vector.extract_strided_slice %173 {offsets = [0, 0], sizes = [1, 128], strides = [1, 1]} : vector<1x384xf32> to vector<1x128xf32>
    %176 = arith.addf %174, %175 : vector<1x128xf32>
    %177 = arith.negf %176 : vector<1x128xf32>
    %178 = math.exp %177 : vector<1x128xf32>
    %cst_70 = arith.constant 1.000000e+00 : f32
    %179 = vector.broadcast %cst_70 : f32 to vector<1x128xf32>
    %180 = arith.addf %179, %178 : vector<1x128xf32>
    %181 = arith.divf %179, %180 : vector<1x128xf32>
    %182 = vector.extract_strided_slice %171 {offsets = [0, 128], sizes = [1, 128], strides = [1, 1]} : vector<1x384xf32> to vector<1x128xf32>
    %183 = vector.extract_strided_slice %173 {offsets = [0, 128], sizes = [1, 128], strides = [1, 1]} : vector<1x384xf32> to vector<1x128xf32>
    %184 = arith.addf %182, %183 : vector<1x128xf32>
    %185 = arith.negf %184 : vector<1x128xf32>
    %186 = math.exp %185 : vector<1x128xf32>
    %cst_71 = arith.constant 1.000000e+00 : f32
    %187 = vector.broadcast %cst_71 : f32 to vector<1x128xf32>
    %188 = arith.addf %187, %186 : vector<1x128xf32>
    %189 = arith.divf %187, %188 : vector<1x128xf32>
    %190 = vector.extract_strided_slice %171 {offsets = [0, 256], sizes = [1, 128], strides = [1, 1]} : vector<1x384xf32> to vector<1x128xf32>
    %191 = vector.extract_strided_slice %173 {offsets = [0, 256], sizes = [1, 128], strides = [1, 1]} : vector<1x384xf32> to vector<1x128xf32>
    %192 = arith.mulf %181, %191 : vector<1x128xf32>
    %193 = arith.addf %190, %192 : vector<1x128xf32>
    %194 = math.tanh %193 : vector<1x128xf32>
    %cst_72 = arith.constant 1.000000e+00 : f32
    %195 = vector.broadcast %cst_72 : f32 to vector<1x128xf32>
    %196 = arith.subf %195, %189 : vector<1x128xf32>
    %197 = arith.mulf %196, %194 : vector<1x128xf32>
    %198 = arith.mulf %189, %169 : vector<1x128xf32>
    %199 = arith.addf %197, %198 : vector<1x128xf32>
    %c4_73 = arith.constant 4 : index
    %c0_74 = arith.constant 0 : index
    %200 = vector.load %arg12[%c4_73, %c0_74] : memref<8x128xf32, #tpu.memory_space<vmem>>, vector<1x128xf32>
    tpu.vector_store %arg12[%c4_73, %c0_74], %199 {strides = array<i32>} : memref<8x128xf32, #tpu.memory_space<vmem>>, vector<1x128xf32>,
    %201 = vector.extract_strided_slice %47 {offsets = [5, 0], sizes = [1, 384], strides = [1, 1]} : vector<8x384xf32> to vector<1x384xf32>
    %cst_75 = arith.constant dense<0.000000e+00> : vector<1x384xf32>
    %202 = tpu.matmul %199, %48, %cst_75 {dimension_numbers = #tpu.dot_dimension_numbers<[1], [0], [0], [1], [0, 0, 1, 1], [], []>} : vector<1x128xf32>, vector<128x384xf32>, vector<1x384xf32> -> vector<1x384xf32>
    %203 = arith.addf %202, %49 : vector<1x384xf32>
    %204 = vector.extract_strided_slice %201 {offsets = [0, 0], sizes = [1, 128], strides = [1, 1]} : vector<1x384xf32> to vector<1x128xf32>
    %205 = vector.extract_strided_slice %203 {offsets = [0, 0], sizes = [1, 128], strides = [1, 1]} : vector<1x384xf32> to vector<1x128xf32>
    %206 = arith.addf %204, %205 : vector<1x128xf32>
    %207 = arith.negf %206 : vector<1x128xf32>
    %208 = math.exp %207 : vector<1x128xf32>
    %cst_76 = arith.constant 1.000000e+00 : f32
    %209 = vector.broadcast %cst_76 : f32 to vector<1x128xf32>
    %210 = arith.addf %209, %208 : vector<1x128xf32>
    %211 = arith.divf %209, %210 : vector<1x128xf32>
    %212 = vector.extract_strided_slice %201 {offsets = [0, 128], sizes = [1, 128], strides = [1, 1]} : vector<1x384xf32> to vector<1x128xf32>
    %213 = vector.extract_strided_slice %203 {offsets = [0, 128], sizes = [1, 128], strides = [1, 1]} : vector<1x384xf32> to vector<1x128xf32>
    %214 = arith.addf %212, %213 : vector<1x128xf32>
    %215 = arith.negf %214 : vector<1x128xf32>
    %216 = math.exp %215 : vector<1x128xf32>
    %cst_77 = arith.constant 1.000000e+00 : f32
    %217 = vector.broadcast %cst_77 : f32 to vector<1x128xf32>
    %218 = arith.addf %217, %216 : vector<1x128xf32>
    %219 = arith.divf %217, %218 : vector<1x128xf32>
    %220 = vector.extract_strided_slice %201 {offsets = [0, 256], sizes = [1, 128], strides = [1, 1]} : vector<1x384xf32> to vector<1x128xf32>
    %221 = vector.extract_strided_slice %203 {offsets = [0, 256], sizes = [1, 128], strides = [1, 1]} : vector<1x384xf32> to vector<1x128xf32>
    %222 = arith.mulf %211, %221 : vector<1x128xf32>
    %223 = arith.addf %220, %222 : vector<1x128xf32>
    %224 = math.tanh %223 : vector<1x128xf32>
    %cst_78 = arith.constant 1.000000e+00 : f32
    %225 = vector.broadcast %cst_78 : f32 to vector<1x128xf32>
    %226 = arith.subf %225, %219 : vector<1x128xf32>
    %227 = arith.mulf %226, %224 : vector<1x128xf32>
    %228 = arith.mulf %219, %199 : vector<1x128xf32>
    %229 = arith.addf %227, %228 : vector<1x128xf32>
    %c5_79 = arith.constant 5 : index
    %c0_80 = arith.constant 0 : index
    %230 = vector.load %arg12[%c5_79, %c0_80] : memref<8x128xf32, #tpu.memory_space<vmem>>, vector<1x128xf32>
    tpu.vector_store %arg12[%c5_79, %c0_80], %229 {strides = array<i32>} : memref<8x128xf32, #tpu.memory_space<vmem>>, vector<1x128xf32>,
    %231 = vector.extract_strided_slice %47 {offsets = [6, 0], sizes = [1, 384], strides = [1, 1]} : vector<8x384xf32> to vector<1x384xf32>
    %cst_81 = arith.constant dense<0.000000e+00> : vector<1x384xf32>
    %232 = tpu.matmul %229, %48, %cst_81 {dimension_numbers = #tpu.dot_dimension_numbers<[1], [0], [0], [1], [0, 0, 1, 1], [], []>} : vector<1x128xf32>, vector<128x384xf32>, vector<1x384xf32> -> vector<1x384xf32>
    %233 = arith.addf %232, %49 : vector<1x384xf32>
    %234 = vector.extract_strided_slice %231 {offsets = [0, 0], sizes = [1, 128], strides = [1, 1]} : vector<1x384xf32> to vector<1x128xf32>
    %235 = vector.extract_strided_slice %233 {offsets = [0, 0], sizes = [1, 128], strides = [1, 1]} : vector<1x384xf32> to vector<1x128xf32>
    %236 = arith.addf %234, %235 : vector<1x128xf32>
    %237 = arith.negf %236 : vector<1x128xf32>
    %238 = math.exp %237 : vector<1x128xf32>
    %cst_82 = arith.constant 1.000000e+00 : f32
    %239 = vector.broadcast %cst_82 : f32 to vector<1x128xf32>
    %240 = arith.addf %239, %238 : vector<1x128xf32>
    %241 = arith.divf %239, %240 : vector<1x128xf32>
    %242 = vector.extract_strided_slice %231 {offsets = [0, 128], sizes = [1, 128], strides = [1, 1]} : vector<1x384xf32> to vector<1x128xf32>
    %243 = vector.extract_strided_slice %233 {offsets = [0, 128], sizes = [1, 128], strides = [1, 1]} : vector<1x384xf32> to vector<1x128xf32>
    %244 = arith.addf %242, %243 : vector<1x128xf32>
    %245 = arith.negf %244 : vector<1x128xf32>
    %246 = math.exp %245 : vector<1x128xf32>
    %cst_83 = arith.constant 1.000000e+00 : f32
    %247 = vector.broadcast %cst_83 : f32 to vector<1x128xf32>
    %248 = arith.addf %247, %246 : vector<1x128xf32>
    %249 = arith.divf %247, %248 : vector<1x128xf32>
    %250 = vector.extract_strided_slice %231 {offsets = [0, 256], sizes = [1, 128], strides = [1, 1]} : vector<1x384xf32> to vector<1x128xf32>
    %251 = vector.extract_strided_slice %233 {offsets = [0, 256], sizes = [1, 128], strides = [1, 1]} : vector<1x384xf32> to vector<1x128xf32>
    %252 = arith.mulf %241, %251 : vector<1x128xf32>
    %253 = arith.addf %250, %252 : vector<1x128xf32>
    %254 = math.tanh %253 : vector<1x128xf32>
    %cst_84 = arith.constant 1.000000e+00 : f32
    %255 = vector.broadcast %cst_84 : f32 to vector<1x128xf32>
    %256 = arith.subf %255, %249 : vector<1x128xf32>
    %257 = arith.mulf %256, %254 : vector<1x128xf32>
    %258 = arith.mulf %249, %229 : vector<1x128xf32>
    %259 = arith.addf %257, %258 : vector<1x128xf32>
    %c6_85 = arith.constant 6 : index
    %c0_86 = arith.constant 0 : index
    %260 = vector.load %arg12[%c6_85, %c0_86] : memref<8x128xf32, #tpu.memory_space<vmem>>, vector<1x128xf32>
    tpu.vector_store %arg12[%c6_85, %c0_86], %259 {strides = array<i32>} : memref<8x128xf32, #tpu.memory_space<vmem>>, vector<1x128xf32>,
    %261 = vector.extract_strided_slice %47 {offsets = [7, 0], sizes = [1, 384], strides = [1, 1]} : vector<8x384xf32> to vector<1x384xf32>
    %cst_87 = arith.constant dense<0.000000e+00> : vector<1x384xf32>
    %262 = tpu.matmul %259, %48, %cst_87 {dimension_numbers = #tpu.dot_dimension_numbers<[1], [0], [0], [1], [0, 0, 1, 1], [], []>} : vector<1x128xf32>, vector<128x384xf32>, vector<1x384xf32> -> vector<1x384xf32>
    %263 = arith.addf %262, %49 : vector<1x384xf32>
    %264 = vector.extract_strided_slice %261 {offsets = [0, 0], sizes = [1, 128], strides = [1, 1]} : vector<1x384xf32> to vector<1x128xf32>
    %265 = vector.extract_strided_slice %263 {offsets = [0, 0], sizes = [1, 128], strides = [1, 1]} : vector<1x384xf32> to vector<1x128xf32>
    %266 = arith.addf %264, %265 : vector<1x128xf32>
    %267 = arith.negf %266 : vector<1x128xf32>
    %268 = math.exp %267 : vector<1x128xf32>
    %cst_88 = arith.constant 1.000000e+00 : f32
    %269 = vector.broadcast %cst_88 : f32 to vector<1x128xf32>
    %270 = arith.addf %269, %268 : vector<1x128xf32>
    %271 = arith.divf %269, %270 : vector<1x128xf32>
    %272 = vector.extract_strided_slice %261 {offsets = [0, 128], sizes = [1, 128], strides = [1, 1]} : vector<1x384xf32> to vector<1x128xf32>
    %273 = vector.extract_strided_slice %263 {offsets = [0, 128], sizes = [1, 128], strides = [1, 1]} : vector<1x384xf32> to vector<1x128xf32>
    %274 = arith.addf %272, %273 : vector<1x128xf32>
    %275 = arith.negf %274 : vector<1x128xf32>
    %276 = math.exp %275 : vector<1x128xf32>
    %cst_89 = arith.constant 1.000000e+00 : f32
    %277 = vector.broadcast %cst_89 : f32 to vector<1x128xf32>
    %278 = arith.addf %277, %276 : vector<1x128xf32>
    %279 = arith.divf %277, %278 : vector<1x128xf32>
    %280 = vector.extract_strided_slice %261 {offsets = [0, 256], sizes = [1, 128], strides = [1, 1]} : vector<1x384xf32> to vector<1x128xf32>
    %281 = vector.extract_strided_slice %263 {offsets = [0, 256], sizes = [1, 128], strides = [1, 1]} : vector<1x384xf32> to vector<1x128xf32>
    %282 = arith.mulf %271, %281 : vector<1x128xf32>
    %283 = arith.addf %280, %282 : vector<1x128xf32>
    %284 = math.tanh %283 : vector<1x128xf32>
    %cst_90 = arith.constant 1.000000e+00 : f32
    %285 = vector.broadcast %cst_90 : f32 to vector<1x128xf32>
    %286 = arith.subf %285, %279 : vector<1x128xf32>
    %287 = arith.mulf %286, %284 : vector<1x128xf32>
    %288 = arith.mulf %279, %259 : vector<1x128xf32>
    %289 = arith.addf %287, %288 : vector<1x128xf32>
    %c7_91 = arith.constant 7 : index
    %c0_92 = arith.constant 0 : index
    %290 = vector.load %arg12[%c7_91, %c0_92] : memref<8x128xf32, #tpu.memory_space<vmem>>, vector<1x128xf32>
    tpu.vector_store %arg12[%c7_91, %c0_92], %289 {strides = array<i32>} : memref<8x128xf32, #tpu.memory_space<vmem>>, vector<1x128xf32>,
    %c0_93 = arith.constant 0 : index
    %c0_94 = arith.constant 0 : index
    %291 = vector.load %arg10[%c0_93, %c0_94] : memref<1x128xf32, #tpu.memory_space<vmem>>, vector<1x128xf32>
    tpu.vector_store %arg10[%c0_93, %c0_94], %289 {strides = array<i32>} : memref<1x128xf32, #tpu.memory_space<vmem>>, vector<1x128xf32>,
    %c0_95 = arith.constant 0 : index
    %c0_96 = arith.constant 0 : index
    %292 = vector.load %arg12[%c0_95, %c0_96] : memref<8x128xf32, #tpu.memory_space<vmem>>, vector<8x128xf32>
    %c0_97 = arith.constant 0 : index
    %c0_98 = arith.constant 0 : index
    %293 = vector.load %arg7[%c0_97, %c0_98] : memref<128x128xf32, #tpu.memory_space<vmem>>, vector<128x128xf32>
    %cst_99 = arith.constant dense<0.000000e+00> : vector<8x128xf32>
    %294 = tpu.matmul %292, %293, %cst_99 {dimension_numbers = #tpu.dot_dimension_numbers<[1], [0], [0], [1], [0, 0, 1, 1], [], []>} : vector<8x128xf32>, vector<128x128xf32>, vector<8x128xf32> -> vector<8x128xf32>
    %c0_100 = arith.constant 0 : index
    %c0_101 = arith.constant 0 : index
    %295 = vector.load %arg8[%c0_100, %c0_101] : memref<1x128xf32, #tpu.memory_space<vmem>>, vector<1x128xf32>
    %296 = vector.broadcast %295 : vector<1x128xf32> to vector<8x128xf32>
    %297 = arith.addf %294, %296 : vector<8x128xf32>
    %cst_102 = arith.constant dense<0xFF800000> : vector<8xf32>
    %298 = vector.multi_reduction <maximumf>, %297, %cst_102 [1] : vector<8x128xf32> to vector<8xf32>
    %299 = vector.shape_cast %298 : vector<8xf32> to vector<8x1xf32>
    %300 = vector.broadcast %299 : vector<8x1xf32> to vector<8x128xf32>
    %301 = arith.subf %297, %300 : vector<8x128xf32>
    %302 = math.exp %301 : vector<8x128xf32>
    %cst_103 = arith.constant dense<0.000000e+00> : vector<8xf32>
    %303 = vector.multi_reduction <add>, %302, %cst_103 [1] : vector<8x128xf32> to vector<8xf32>
    %304 = vector.shape_cast %303 : vector<8xf32> to vector<8x1xf32>
    %305 = math.log %304 : vector<8x1xf32>
    %306 = arith.addf %299, %305 : vector<8x1xf32>
    %307 = vector.broadcast %306 : vector<8x1xf32> to vector<8x128xf32>
    %308 = arith.subf %297, %307 : vector<8x128xf32>
    %c0_104 = arith.constant 0 : index
    %c0_105 = arith.constant 0 : index
    %309 = vector.load %arg9[%c0_104, %c0_105] : memref<8x128xf32, #tpu.memory_space<vmem>>, vector<8x128xf32>
    tpu.vector_store %arg9[%c0_104, %c0_105], %308 {strides = array<i32>} : memref<8x128xf32, #tpu.memory_space<vmem>>, vector<8x128xf32>,
    return
  }
}

</mosaic_0001>

<llo_original>
// kernel: decoder_gru_forward.1
$region0: #{decoder_gru_forward.1}
  #allocation0 [shape = 'u32[]', space=smem, size = 0x4, offset = 0x4, fixed_abs, tag = 'smem constant byte address 0x4 - core index']
  #allocation1 [shape = 'u32[144,128]{1,0:T(1,128)}', space=vmem, size = 0x12000, scoped, tag = 'internal scratch']
  #allocation2 [shape = 'f32[8,128]{1,0:T(8,128)}', space=vmem, size = 0x1000, scoped, tag = 'scratch operand']
  #allocation3 [shape = 'f32[8,128]{1,0:T(8,128)}', space=vmem, size = 0x1000, scoped, tag = 'scratch operand']
  %s0 = inlined_call_operand.vmem [shape: s32[8], index: 0, kind: input, shape index: {}]
  %s1 = inlined_call_operand.vmem [shape: f32[1,128], index: 1, kind: input, shape index: {}]
  %s2 = inlined_call_operand.hbm [shape: f32[32,1,128], index: 2, kind: input, shape index: {}]
  %s3 = inlined_call_operand.hbm [shape: f32[128,384], index: 3, kind: input, shape index: {}]
  %s4 = inlined_call_operand.vmem [shape: f32[1,384], index: 4, kind: input, shape index: {}]
  %s5 = inlined_call_operand.hbm [shape: f32[128,384], index: 5, kind: input, shape index: {}]
  %s6 = inlined_call_operand.vmem [shape: f32[1,384], index: 6, kind: input, shape index: {}]
  %s7 = inlined_call_operand.hbm [shape: f32[128,128], index: 7, kind: input, shape index: {}]
  %s8 = inlined_call_operand.vmem [shape: f32[1,128], index: 8, kind: input, shape index: {}]
  %s9 = inlined_call_operand.hbm [shape: f32[8,128], index: 9, kind: output, shape index: {0}]
  %s10 = inlined_call_operand.vmem [shape: f32[1,128], index: 10, kind: output, shape index: {1}]
  %11 = xla_tuple %s9, %s10
  %s12 = sld [smem:[#allocation0]]
  $region74: #{decoder_gru_forward.1} parent=0
    _
  %s14 = ssub.s32 1, %s12
  %s15 = scalar_select 0, %s14, %s12
  $region1: #{decoder_gru_forward.1} parent=0
    #allocation4 [shape = 'u8[512]{0}', space=smem, size = 0x200, scoped, tag = 'input window, operand 0, single buffered']
    #allocation5 [shape = 's32[1]{0}', space=sflag, size = 0x4, scoped, tag = 'scoped memory for decoder_gru_forward.1']
    #allocation6 [shape = 's32[1]{0}', space=sflag, size = 0x4, scoped, tag = 'scoped memory for decoder_gru_forward.1']
    #allocation7 [shape = 's32[1]{0}', space=sflag, size = 0x4, scoped, tag = 'scoped memory for decoder_gru_forward.1']
    #allocation8 [shape = 'u8[16384]{0}', space=vmem, size = 0x4000, scoped, tag = 'input window, operand 2, single buffered']
    #allocation9 [shape = 'u8[196608]{0}', space=vmem, size = 0x30000, scoped, tag = 'input window, operand 3, single buffered']
    #allocation10 [shape = 's32[1]{0}', space=sflag, size = 0x4, scoped, tag = 'scoped memory for decoder_gru_forward.1']
    #allocation11 [shape = 'u8[196608]{0}', space=vmem, size = 0x30000, scoped, tag = 'input window, operand 5, single buffered']
    #allocation12 [shape = 'u8[65536]{0}', space=vmem, size = 0x10000, scoped, tag = 'input window, operand 7, single buffered']
    #allocation13 [shape = 's32[1]{0}', space=sflag, size = 0x4, scoped, tag = 'scoped memory for decoder_gru_forward.1']
    #allocation14 [shape = 'u8[4096]{0}', space=vmem, size = 0x1000, scoped, tag = 'output window, operand 0, single buffered']
    %16 = vsyncpa [#allocation7], 0
    %17 = vsyncpa [#allocation5], 0
    %18 = vsyncpa [#allocation10], 0
    %19 = vsyncpa [#allocation13], 0
    %20 = vsyncpa [#allocation6], 0
    // Predicated region
    $region2: #{decoder_gru_forward.1} parent=1 // pred_check
      _
    $region3: #{decoder_gru_forward.1} parent=1 // pred_check_branch
      %22 = sbr.rel (0) target = $region5
    $region4: #{decoder_gru_forward.1} parent=1 // pred_region
      %s24 = ssub.s32 16, 16
      %25 = vsyncadd [#allocation7], %s24
      %s27 = sshll.u32 %s0, 4
      %s28 = int_to_ptr.vmem [resolvable:$true] %s27
      %30 = dma.vmem_to_smem %s28, 16, [#allocation4], [#allocation7]
    $region5: #{decoder_gru_forward.1} parent=1 // pred_fallthru
      _
    // Predicated region
    $region6: #{decoder_gru_forward.1} parent=1 // pred_check
      _
    $region7: #{decoder_gru_forward.1} parent=1 // pred_check_branch
      %32 = sbr.rel (0) target = $region9
    $region8: #{decoder_gru_forward.1} parent=1 // pred_region
      _
    $region9: #{decoder_gru_forward.1} parent=1 // pred_fallthru
      _
    // Predicated region
    $region10: #{decoder_gru_forward.1} parent=1 // pred_check
      _
    $region11: #{decoder_gru_forward.1} parent=1 // pred_check_branch
      %34 = sbr.rel (0) target = $region13
    $region12: #{decoder_gru_forward.1} parent=1 // pred_region
      %s36 = ssub.s32 512, 512
      %37 = vsyncadd [#allocation5], %s36
      %s38 = sshll.u32 [#allocation8], 4
      %s39 = int_to_ptr.vmem [resolvable:$true] %s38
      %44 = dma.hbm_to_vmem [thread:$0]  %s2, 512, %s39, [#allocation5], 16, 16, 1
    $region13: #{decoder_gru_forward.1} parent=1 // pred_fallthru
      _
    // Predicated region
    $region14: #{decoder_gru_forward.1} parent=1 // pred_check
      _
    $region15: #{decoder_gru_forward.1} parent=1 // pred_check_branch
      %46 = sbr.rel (0) target = $region17
    $region16: #{decoder_gru_forward.1} parent=1 // pred_region
      %s48 = ssub.s32 6144, 6144
      %49 = vsyncadd [#allocation10], %s48
      %s50 = sshll.u32 [#allocation9], 4
      %s51 = int_to_ptr.vmem [resolvable:$true] %s50
      %56 = dma.hbm_to_vmem [thread:$0]  %s3, 6144, %s51, [#allocation10], 384, 384, 24
    $region17: #{decoder_gru_forward.1} parent=1 // pred_fallthru
      _
    // Predicated region
    $region18: #{decoder_gru_forward.1} parent=1 // pred_check
      _
    $region19: #{decoder_gru_forward.1} parent=1 // pred_check_branch
      %58 = sbr.rel (0) target = $region21
    $region20: #{decoder_gru_forward.1} parent=1 // pred_region
      _
    $region21: #{decoder_gru_forward.1} parent=1 // pred_fallthru
      _
    // Predicated region
    $region22: #{decoder_gru_forward.1} parent=1 // pred_check
      _
    $region23: #{decoder_gru_forward.1} parent=1 // pred_check_branch
      %60 = sbr.rel (0) target = $region25
    $region24: #{decoder_gru_forward.1} parent=1 // pred_region
      %s62 = ssub.s32 6144, 6144
      %63 = vsyncadd [#allocation10], %s62
      %s64 = sshll.u32 [#allocation11], 4
      %s65 = int_to_ptr.vmem [resolvable:$true] %s64
      %70 = dma.hbm_to_vmem [thread:$0]  %s5, 6144, %s65, [#allocation10], 384, 384, 24
    $region25: #{decoder_gru_forward.1} parent=1 // pred_fallthru
      _
    // Predicated region
    $region26: #{decoder_gru_forward.1} parent=1 // pred_check
      _
    $region27: #{decoder_gru_forward.1} parent=1 // pred_check_branch
      %72 = sbr.rel (0) target = $region29
    $region28: #{decoder_gru_forward.1} parent=1 // pred_region
      _
    $region29: #{decoder_gru_forward.1} parent=1 // pred_fallthru
      _
    // Predicated region
    $region30: #{decoder_gru_forward.1} parent=1 // pred_check
      _
    $region31: #{decoder_gru_forward.1} parent=1 // pred_check_branch
      %74 = sbr.rel (0) target = $region33
    $region32: #{decoder_gru_forward.1} parent=1 // pred_region
      %s76 = ssub.s32 2048, 2048
      %77 = vsyncadd [#allocation13], %s76
      %s78 = sshll.u32 [#allocation12], 4
      %s79 = int_to_ptr.vmem [resolvable:$true] %s78
      %84 = dma.hbm_to_vmem [thread:$0]  %s7, 2048, %s79, [#allocation13], 128, 128, 8
    $region33: #{decoder_gru_forward.1} parent=1 // pred_fallthru
      _
    // Predicated region
    $region34: #{decoder_gru_forward.1} parent=1 // pred_check
      _
    $region35: #{decoder_gru_forward.1} parent=1 // pred_check_branch
      %86 = sbr.rel (0) target = $region37
    $region36: #{decoder_gru_forward.1} parent=1 // pred_region
      _
    $region37: #{decoder_gru_forward.1} parent=1 // pred_fallthru
      _
    // Predicated region
    $region38: #{decoder_gru_forward.1} parent=1 // pred_check
      _
    $region39: #{decoder_gru_forward.1} parent=1 // pred_check_branch
      %88 = sbr.rel (0) target = $region41
    $region40: #{decoder_gru_forward.1} parent=1 // pred_region
      %89 = dma.done [#allocation7], 16
    $region41: #{decoder_gru_forward.1} parent=1 // pred_fallthru
      _
    // Predicated region
    $region42: #{decoder_gru_forward.1} parent=1 // pred_check
      _
    $region43: #{decoder_gru_forward.1} parent=1 // pred_check_branch
      %91 = sbr.rel (0) target = $region45
    $region44: #{decoder_gru_forward.1} parent=1 // pred_region
      %92 = dma.done [#allocation5], 512
    $region45: #{decoder_gru_forward.1} parent=1 // pred_fallthru
      _
    // Predicated region
    $region46: #{decoder_gru_forward.1} parent=1 // pred_check
      _
    $region47: #{decoder_gru_forward.1} parent=1 // pred_check_branch
      %94 = sbr.rel (0) target = $region49
    $region48: #{decoder_gru_forward.1} parent=1 // pred_region
      %95 = dma.done [#allocation10], 6144
    $region49: #{decoder_gru_forward.1} parent=1 // pred_fallthru
      _
    // Predicated region
    $region50: #{decoder_gru_forward.1} parent=1 // pred_check
      _
    $region51: #{decoder_gru_forward.1} parent=1 // pred_check_branch
      %97 = sbr.rel (0) target = $region53
    $region52: #{decoder_gru_forward.1} parent=1 // pred_region
      %98 = dma.done [#allocation10], 6144
    $region53: #{decoder_gru_forward.1} parent=1 // pred_fallthru
      _
    // Predicated region
    $region54: #{decoder_gru_forward.1} parent=1 // pred_check
      _
    $region55: #{decoder_gru_forward.1} parent=1 // pred_check_branch
      %100 = sbr.rel (0) target = $region57
    $region56: #{decoder_gru_forward.1} parent=1 // pred_region
      %101 = dma.done [#allocation13], 2048
    $region57: #{decoder_gru_forward.1} parent=1 // pred_fallthru
      _
    %102 = sfence
    %s103 = sld [smem:[#allocation4]]
    %s104 = scalar_lea.vmem [#allocation8], %s103
    %v105 = vld [vmem:[%s104] sm:$0x1]
    %106 = vst [vmem:[#allocation2] sm:$0x1] %v105
    %s107 = sld [smem:[#allocation4 + $0x1]]
    %s108 = scalar_lea.vmem [#allocation8], %s107
    %v109 = vld [vmem:[%s108] sm:$0x1]
    %110 = vst [vmem:[#allocation2 + $0x1] sm:$0x1] %v109
    %s111 = sld [smem:[#allocation4 + $0x2]]
    %s112 = scalar_lea.vmem [#allocation8], %s111
    %v113 = vld [vmem:[%s112] sm:$0x1]
    %114 = vst [vmem:[#allocation2 + $0x2] sm:$0x1] %v113
    %s115 = sld [smem:[#allocation4 + $0x3]]
    %s116 = scalar_lea.vmem [#allocation8], %s115
    %v117 = vld [vmem:[%s116] sm:$0x1]
    %118 = vst [vmem:[#allocation2 + $0x3] sm:$0x1] %v117
    %s119 = sld [smem:[#allocation4 + $0x4]]
    %s120 = scalar_lea.vmem [#allocation8], %s119
    %v121 = vld [vmem:[%s120] sm:$0x1]
    %122 = vst [vmem:[#allocation2 + $0x4] sm:$0x1] %v121
    %s123 = sld [smem:[#allocation4 + $0x5]]
    %s124 = scalar_lea.vmem [#allocation8], %s123
    %v125 = vld [vmem:[%s124] sm:$0x1]
    %126 = vst [vmem:[#allocation2 + $0x5] sm:$0x1] %v125
    %s127 = sld [smem:[#allocation4 + $0x6]]
    %s128 = scalar_lea.vmem [#allocation8], %s127
    %v129 = vld [vmem:[%s128] sm:$0x1]
    %130 = vst [vmem:[#allocation2 + $0x6] sm:$0x1] %v129
    %s131 = sld [smem:[#allocation4 + $0x7]]
    %s132 = scalar_lea.vmem [#allocation8], %s131
    %v133 = vld [vmem:[%s132] sm:$0x1]
    %134 = vst [vmem:[#allocation2 + $0x7] sm:$0x1] %v133
    %v135 = vld [vmem:[#allocation2] sm:$0xff]
    %v136 = vmax.f32 %v135, 0.0
    %v137 = vld [vmem:[#allocation9] sm:$0xff]
    %v138 = vld [vmem:[#allocation9 + $0x8] sm:$0xff]
    %v139 = vld [vmem:[#allocation9 + $0x10] sm:$0xff]
    %v140 = vld [vmem:[#allocation9 + $0x18] sm:$0xff]
    %v141 = vld [vmem:[#allocation9 + $0x20] sm:$0xff]
    %v142 = vld [vmem:[#allocation9 + $0x28] sm:$0xff]
    %v143 = vld [vmem:[#allocation9 + $0x30] sm:$0xff]
    %v144 = vld [vmem:[#allocation9 + $0x38] sm:$0xff]
    %v145 = vld [vmem:[#allocation9 + $0x40] sm:$0xff]
    %v146 = vld [vmem:[#allocation9 + $0x48] sm:$0xff]
    %v147 = vld [vmem:[#allocation9 + $0x50] sm:$0xff]
    %v148 = vld [vmem:[#allocation9 + $0x58] sm:$0xff]
    %v149 = vld [vmem:[#allocation9 + $0x60] sm:$0xff]
    %v150 = vld [vmem:[#allocation9 + $0x68] sm:$0xff]
    %v151 = vld [vmem:[#allocation9 + $0x70] sm:$0xff]
    %v152 = vld [vmem:[#allocation9 + $0x78] sm:$0xff]
    %v153 = vld [vmem:[#allocation9 + $0x80] sm:$0xff]
    %v154 = vld [vmem:[#allocation9 + $0x88] sm:$0xff]
    %v155 = vld [vmem:[#allocation9 + $0x90] sm:$0xff]
    %v156 = vld [vmem:[#allocation9 + $0x98] sm:$0xff]
    %v157 = vld [vmem:[#allocation9 + $0xa0] sm:$0xff]
    %v158 = vld [vmem:[#allocation9 + $0xa8] sm:$0xff]
    %v159 = vld [vmem:[#allocation9 + $0xb0] sm:$0xff]
    %v160 = vld [vmem:[#allocation9 + $0xb8] sm:$0xff]
    %v161 = vld [vmem:[#allocation9 + $0xc0] sm:$0xff]
    %v162 = vld [vmem:[#allocation9 + $0xc8] sm:$0xff]
    %v163 = vld [vmem:[#allocation9 + $0xd0] sm:$0xff]
    %v164 = vld [vmem:[#allocation9 + $0xd8] sm:$0xff]
    %v165 = vld [vmem:[#allocation9 + $0xe0] sm:$0xff]
    %v166 = vld [vmem:[#allocation9 + $0xe8] sm:$0xff]
    %v167 = vld [vmem:[#allocation9 + $0xf0] sm:$0xff]
    %v168 = vld [vmem:[#allocation9 + $0xf8] sm:$0xff]
    %v169 = vld [vmem:[#allocation9 + $0x100] sm:$0xff]
    %v170 = vld [vmem:[#allocation9 + $0x108] sm:$0xff]
    %v171 = vld [vmem:[#allocation9 + $0x110] sm:$0xff]
    %v172 = vld [vmem:[#allocation9 + $0x118] sm:$0xff]
    %v173 = vld [vmem:[#allocation9 + $0x120] sm:$0xff]
    %v174 = vld [vmem:[#allocation9 + $0x128] sm:$0xff]
    %v175 = vld [vmem:[#allocation9 + $0x130] sm:$0xff]
    %v176 = vld [vmem:[#allocation9 + $0x138] sm:$0xff]
    %v177 = vld [vmem:[#allocation9 + $0x140] sm:$0xff]
    %v178 = vld [vmem:[#allocation9 + $0x148] sm:$0xff]
    %v179 = vld [vmem:[#allocation9 + $0x150] sm:$0xff]
    %v180 = vld [vmem:[#allocation9 + $0x158] sm:$0xff]
    %v181 = vld [vmem:[#allocation9 + $0x160] sm:$0xff]
    %v182 = vld [vmem:[#allocation9 + $0x168] sm:$0xff]
    %v183 = vld [vmem:[#allocation9 + $0x170] sm:$0xff]
    %v184 = vld [vmem:[#allocation9 + $0x178] sm:$0xff]
    %v185 = vld [vmem:[%s4] sm:$0x7]
    %v187 = vlaneseq
    %v188 = vshrl.u32 %v187, 7
    %v189 = vsub.s32 0, %v188
    %v190 = vrot.slane %v185, %v189
    %v191 = vlaneseq
    %v192 = vshrl.u32 %v191, 7
    %v193 = vsub.s32 1, %v192
    %v194 = vrot.slane %v185, %v193
    %v195 = vlaneseq
    %v196 = vshrl.u32 %v195, 7
    %v197 = vsub.s32 2, %v196
    %v198 = vrot.slane %v185, %v197
    %202 = vmatprep.subr.mxu0 %v138
    %203 = vmatpush1.msra.mxu0 %v137
    %204 = vmatprep.subr.mxu0 %v141
    %205 = vmatpush1.msra.mxu0 %v140
    %206 = vmatprep.subr.mxu0 %v144
    %207 = vmatpush1.msra.mxu0 %v143
    %208 = vmatprep.subr.mxu0 %v147
    %209 = vmatpush1.msra.mxu0 %v146
    %210 = vmatprep.subr.mxu0 %v150
    %211 = vmatpush1.msra.mxu0 %v149
    %212 = vmatprep.subr.mxu0 %v153
    %213 = vmatpush1.msra.mxu0 %v152
    %214 = vmatprep.subr.mxu0 %v156
    %215 = vmatpush1.msra.mxu0 %v155
    %216 = vmatprep.subr.mxu0 %v159
    %217 = vmatpush1.msra.mxu0 %v158
    %218 = vmatprep.subr.mxu0 %v162
    %219 = vmatpush1.msra.mxu0 %v161
    %220 = vmatprep.subr.mxu0 %v165
    %221 = vmatpush1.msra.mxu0 %v164
    %222 = vmatprep.subr.mxu0 %v168
    %223 = vmatpush1.msra.mxu0 %v167
    %224 = vmatprep.subr.mxu0 %v171
    %225 = vmatpush1.msra.mxu0 %v170
    %226 = vmatprep.subr.mxu0 %v174
    %227 = vmatpush1.msra.mxu0 %v173
    %228 = vmatprep.subr.mxu0 %v177
    %229 = vmatpush1.msra.mxu0 %v176
    %230 = vmatprep.subr.mxu0 %v180
    %231 = vmatpush1.msra.mxu0 %v179
    %232 = vmatprep.subr.mxu0 %v183
    %233 = vmatpush1.msra.mxu0 %v182
    %234 = vmatprep.subr.mxu0 0.0
    %235 = vmatpush1.msra.mxu0 0.0
    %236 = vmatprep.subr.mxu0 0.0
    %237 = vmatpush1.msra.mxu0 0.0
    %238 = vmatprep.subr.mxu0 0.0
    %239 = vmatpush1.msra.mxu0 0.0
    %240 = vmatprep.subr.mxu0 0.0
    %241 = vmatpush1.msra.mxu0 0.0
    %242 = vmatprep.subr.mxu0 0.0
    %243 = vmatpush1.msra.mxu0 0.0
    %244 = vmatprep.subr.mxu0 0.0
    %245 = vmatpush1.msra.mxu0 0.0
    %246 = vmatprep.subr.mxu0 0.0
    %247 = vmatpush1.msra.mxu0 0.0
    %248 = vmatprep.subr.mxu0 0.0
    %249 = vmatpush1.msra.mxu0 0.0
    %250 = vmatprep.subr.mxu0 0.0
    %251 = vmatpush1.msra.mxu0 0.0
    %252 = vmatprep.subr.mxu0 0.0
    %253 = vmatpush1.msra.mxu0 0.0
    %254 = vmatprep.subr.mxu0 0.0
    %255 = vmatpush1.msra.mxu0 0.0
    %256 = vmatprep.subr.mxu0 0.0
    %257 = vmatpush1.msra.mxu0 0.0
    %258 = vmatprep.subr.mxu0 0.0
    %259 = vmatpush1.msra.mxu0 0.0
    %260 = vmatprep.subr.mxu0 0.0
    %261 = vmatpush1.msra.mxu0 0.0
    %262 = vmatprep.subr.mxu0 0.0
    %263 = vmatpush1.msra.mxu0 0.0
    %264 = vmatprep.subr.mxu0 0.0
    %265 = vmatpush1.msra.mxu0 0.0
    %266 = vmatprep.mubr.f32.mxu0 0.0
    %267 = vmatmul.mubr.f32.gmra.mrb[0].mxu0 %v136
    %v268 = vpop.f32.mrb[0].mxu0
    %v269 = vadd.f32 %v190, %v268
    %v270 = vpop.f32.mrb[0].mxu0
    %v271 = vadd.f32 %v194, %v270
    %272 = vdwg.mxu0
    %273 = vmatprep.subr.mxu0 0.0
    %274 = vmatpush1.msra.mxu0 %v139
    %275 = vmatprep.subr.mxu0 0.0
    %276 = vmatpush1.msra.mxu0 %v142
    %277 = vmatprep.subr.mxu0 0.0
    %278 = vmatpush1.msra.mxu0 %v145
    %279 = vmatprep.subr.mxu0 0.0
    %280 = vmatpush1.msra.mxu0 %v148
    %281 = vmatprep.subr.mxu0 0.0
    %282 = vmatpush1.msra.mxu0 %v151
    %283 = vmatprep.subr.mxu0 0.0
    %284 = vmatpush1.msra.mxu0 %v154
    %285 = vmatprep.subr.mxu0 0.0
    %286 = vmatpush1.msra.mxu0 %v157
    %287 = vmatprep.subr.mxu0 0.0
    %288 = vmatpush1.msra.mxu0 %v160
    %289 = vmatprep.subr.mxu0 0.0
    %290 = vmatpush1.msra.mxu0 %v163
    %291 = vmatprep.subr.mxu0 0.0
    %292 = vmatpush1.msra.mxu0 %v166
    %293 = vmatprep.subr.mxu0 0.0
    %294 = vmatpush1.msra.mxu0 %v169
    %295 = vmatprep.subr.mxu0 0.0
    %296 = vmatpush1.msra.mxu0 %v172
    %297 = vmatprep.subr.mxu0 0.0
    %298 = vmatpush1.msra.mxu0 %v175
    %299 = vmatprep.subr.mxu0 0.0
    %300 = vmatpush1.msra.mxu0 %v178
    %301 = vmatprep.subr.mxu0 0.0
    %302 = vmatpush1.msra.mxu0 %v181
    %303 = vmatprep.subr.mxu0 0.0
    %304 = vmatpush1.msra.mxu0 %v184
    %305 = vmatprep.subr.mxu0 0.0
    %306 = vmatpush1.msra.mxu0 0.0
    %307 = vmatprep.subr.mxu0 0.0
    %308 = vmatpush1.msra.mxu0 0.0
    %309 = vmatprep.subr.mxu0 0.0
    %310 = vmatpush1.msra.mxu0 0.0
    %311 = vmatprep.subr.mxu0 0.0
    %312 = vmatpush1.msra.mxu0 0.0
    %313 = vmatprep.subr.mxu0 0.0
    %314 = vmatpush1.msra.mxu0 0.0
    %315 = vmatprep.subr.mxu0 0.0
    %316 = vmatpush1.msra.mxu0 0.0
    %317 = vmatprep.subr.mxu0 0.0
    %318 = vmatpush1.msra.mxu0 0.0
    %319 = vmatprep.subr.mxu0 0.0
    %320 = vmatpush1.msra.mxu0 0.0
    %321 = vmatprep.subr.mxu0 0.0
    %322 = vmatpush1.msra.mxu0 0.0
    %323 = vmatprep.subr.mxu0 0.0
    %324 = vmatpush1.msra.mxu0 0.0
    %325 = vmatprep.subr.mxu0 0.0
    %326 = vmatpush1.msra.mxu0 0.0
    %327 = vmatprep.subr.mxu0 0.0
    %328 = vmatpush1.msra.mxu0 0.0
    %329 = vmatprep.subr.mxu0 0.0
    %330 = vmatpush1.msra.mxu0 0.0
    %331 = vmatprep.subr.mxu0 0.0
    %332 = vmatpush1.msra.mxu0 0.0
    %333 = vmatprep.subr.mxu0 0.0
    %334 = vmatpush1.msra.mxu0 0.0
    %335 = vmatprep.subr.mxu0 0.0
    %336 = vmatpush1.msra.mxu0 0.0
    %337 = vmatprep.mubr.f32.mxu0 0.0
    %338 = vmatmul.mubr.f32.gmra.mrb[0].mxu0 %v136
    %v339 = vpop.f32.mrb[0].mxu0
    %v340 = vadd.f32 %v198, %v339
    %v341 = vpop.f32.mrb[0].mxu0
    %342 = vdwg.mxu0
    %v343 = vld [vmem:[#allocation11] sm:$0xff]
    %v344 = vld [vmem:[#allocation11 + $0x8] sm:$0xff]
    %v345 = vld [vmem:[#allocation11 + $0x10] sm:$0xff]
    %v346 = vld [vmem:[#allocation11 + $0x18] sm:$0xff]
    %v347 = vld [vmem:[#allocation11 + $0x20] sm:$0xff]
    %v348 = vld [vmem:[#allocation11 + $0x28] sm:$0xff]
    %v349 = vld [vmem:[#allocation11 + $0x30] sm:$0xff]
    %v350 = vld [vmem:[#allocation11 + $0x38] sm:$0xff]
    %v351 = vld [vmem:[#allocation11 + $0x40] sm:$0xff]
    %v352 = vld [vmem:[#allocation11 + $0x48] sm:$0xff]
    %v353 = vld [vmem:[#allocation11 + $0x50] sm:$0xff]
    %v354 = vld [vmem:[#allocation11 + $0x58] sm:$0xff]
    %v355 = vld [vmem:[#allocation11 + $0x60] sm:$0xff]
    %v356 = vld [vmem:[#allocation11 + $0x68] sm:$0xff]
    %v357 = vld [vmem:[#allocation11 + $0x70] sm:$0xff]
    %v358 = vld [vmem:[#allocation11 + $0x78] sm:$0xff]
    %v359 = vld [vmem:[#allocation11 + $0x80] sm:$0xff]
    %v360 = vld [vmem:[#allocation11 + $0x88] sm:$0xff]
    %v361 = vld [vmem:[#allocation11 + $0x90] sm:$0xff]
    %v362 = vld [vmem:[#allocation11 + $0x98] sm:$0xff]
    %v363 = vld [vmem:[#allocation11 + $0xa0] sm:$0xff]
    %v364 = vld [vmem:[#allocation11 + $0xa8] sm:$0xff]
    %v365 = vld [vmem:[#allocation11 + $0xb0] sm:$0xff]
    %v366 = vld [vmem:[#allocation11 + $0xb8] sm:$0xff]
    %v367 = vld [vmem:[#allocation11 + $0xc0] sm:$0xff]
    %v368 = vld [vmem:[#allocation11 + $0xc8] sm:$0xff]
    %v369 = vld [vmem:[#allocation11 + $0xd0] sm:$0xff]
    %v370 = vld [vmem:[#allocation11 + $0xd8] sm:$0xff]
    %v371 = vld [vmem:[#allocation11 + $0xe0] sm:$0xff]
    %v372 = vld [vmem:[#allocation11 + $0xe8] sm:$0xff]
    %v373 = vld [vmem:[#allocation11 + $0xf0] sm:$0xff]
    %v374 = vld [vmem:[#allocation11 + $0xf8] sm:$0xff]
    %v375 = vld [vmem:[#allocation11 + $0x100] sm:$0xff]
    %v376 = vld [vmem:[#allocation11 + $0x108] sm:$0xff]
    %v377 = vld [vmem:[#allocation11 + $0x110] sm:$0xff]
    %v378 = vld [vmem:[#allocation11 + $0x118] sm:$0xff]
    %v379 = vld [vmem:[#allocation11 + $0x120] sm:$0xff]
    %v380 = vld [vmem:[#allocation11 + $0x128] sm:$0xff]
    %v381 = vld [vmem:[#allocation11 + $0x130] sm:$0xff]
    %v382 = vld [vmem:[#allocation11 + $0x138] sm:$0xff]
    %v383 = vld [vmem:[#allocation11 + $0x140] sm:$0xff]
    %v384 = vld [vmem:[#allocation11 + $0x148] sm:$0xff]
    %v385 = vld [vmem:[#allocation11 + $0x150] sm:$0xff]
    %v386 = vld [vmem:[#allocation11 + $0x158] sm:$0xff]
    %v387 = vld [vmem:[#allocation11 + $0x160] sm:$0xff]
    %v388 = vld [vmem:[#allocation11 + $0x168] sm:$0xff]
    %v389 = vld [vmem:[#allocation11 + $0x170] sm:$0xff]
    %v390 = vld [vmem:[#allocation11 + $0x178] sm:$0xff]
    %v391 = vld [vmem:[%s6] sm:$0x7]
    %v392 = vld [vmem:[%s1] sm:$0x1]
    %v394 = vlaneseq
    %v395 = vshrl.u32 %v394, 7
    %v396 = vsub.s32 0, %v395
    %v397 = vrot.slane %v391, %v396
    %v398 = vlaneseq
    %v399 = vshrl.u32 %v398, 7
    %v400 = vsub.s32 1, %v399
    %v401 = vrot.slane %v391, %v400
    %v402 = vlaneseq
    %v403 = vshrl.u32 %v402, 7
    %v404 = vsub.s32 2, %v403
    %v405 = vrot.slane %v391, %v404
    %409 = vmatprep.subr.mxu0 %v344
    %410 = vmatpush1.msra.mxu0 %v343
    %411 = vmatprep.subr.mxu0 %v347
    %412 = vmatpush1.msra.mxu0 %v346
    %413 = vmatprep.subr.mxu0 %v350
    %414 = vmatpush1.msra.mxu0 %v349
    %415 = vmatprep.subr.mxu0 %v353
    %416 = vmatpush1.msra.mxu0 %v352
    %417 = vmatprep.subr.mxu0 %v356
    %418 = vmatpush1.msra.mxu0 %v355
    %419 = vmatprep.subr.mxu0 %v359
    %420 = vmatpush1.msra.mxu0 %v358
    %421 = vmatprep.subr.mxu0 %v362
    %422 = vmatpush1.msra.mxu0 %v361
    %423 = vmatprep.subr.mxu0 %v365
    %424 = vmatpush1.msra.mxu0 %v364
    %425 = vmatprep.subr.mxu0 %v368
    %426 = vmatpush1.msra.mxu0 %v367
    %427 = vmatprep.subr.mxu0 %v371
    %428 = vmatpush1.msra.mxu0 %v370
    %429 = vmatprep.subr.mxu0 %v374
    %430 = vmatpush1.msra.mxu0 %v373
    %431 = vmatprep.subr.mxu0 %v377
    %432 = vmatpush1.msra.mxu0 %v376
    %433 = vmatprep.subr.mxu0 %v380
    %434 = vmatpush1.msra.mxu0 %v379
    %435 = vmatprep.subr.mxu0 %v383
    %436 = vmatpush1.msra.mxu0 %v382
    %437 = vmatprep.subr.mxu0 %v386
    %438 = vmatpush1.msra.mxu0 %v385
    %439 = vmatprep.subr.mxu0 %v389
    %440 = vmatpush1.msra.mxu0 %v388
    %441 = vmatprep.subr.mxu0 0.0
    %442 = vmatpush1.msra.mxu0 0.0
    %443 = vmatprep.subr.mxu0 0.0
    %444 = vmatpush1.msra.mxu0 0.0
    %445 = vmatprep.subr.mxu0 0.0
    %446 = vmatpush1.msra.mxu0 0.0
    %447 = vmatprep.subr.mxu0 0.0
    %448 = vmatpush1.msra.mxu0 0.0
    %449 = vmatprep.subr.mxu0 0.0
    %450 = vmatpush1.msra.mxu0 0.0
    %451 = vmatprep.subr.mxu0 0.0
    %452 = vmatpush1.msra.mxu0 0.0
    %453 = vmatprep.subr.mxu0 0.0
    %454 = vmatpush1.msra.mxu0 0.0
    %455 = vmatprep.subr.mxu0 0.0
    %456 = vmatpush1.msra.mxu0 0.0
    %457 = vmatprep.subr.mxu0 0.0
    %458 = vmatpush1.msra.mxu0 0.0
    %459 = vmatprep.subr.mxu0 0.0
    %460 = vmatpush1.msra.mxu0 0.0
    %461 = vmatprep.subr.mxu0 0.0
    %462 = vmatpush1.msra.mxu0 0.0
    %463 = vmatprep.subr.mxu0 0.0
    %464 = vmatpush1.msra.mxu0 0.0
    %465 = vmatprep.subr.mxu0 0.0
    %466 = vmatpush1.msra.mxu0 0.0
    %467 = vmatprep.subr.mxu0 0.0
    %468 = vmatpush1.msra.mxu0 0.0
    %469 = vmatprep.subr.mxu0 0.0
    %470 = vmatpush1.msra.mxu0 0.0
    %471 = vmatprep.subr.mxu0 0.0
    %472 = vmatpush1.msra.mxu0 0.0
    %473 = vmatprep.mubr.f32.mxu0 0.0
    %474 = vmatmul.mubr.f32.gmra.mrb[0].mxu0 %v392
    %v475 = vpop.f32.mrb[0].mxu0
    %v476 = vadd.f32 %v397, %v475
    %v477 = vpop.f32.mrb[0].mxu0
    %v478 = vadd.f32 %v401, %v477
    %479 = vdwg.mxu0
    %480 = vmatprep.subr.mxu0 0.0
    %481 = vmatpush1.msra.mxu0 %v345
    %482 = vmatprep.subr.mxu0 0.0
    %483 = vmatpush1.msra.mxu0 %v348
    %484 = vmatprep.subr.mxu0 0.0
    %485 = vmatpush1.msra.mxu0 %v351
    %486 = vmatprep.subr.mxu0 0.0
    %487 = vmatpush1.msra.mxu0 %v354
    %488 = vmatprep.subr.mxu0 0.0
    %489 = vmatpush1.msra.mxu0 %v357
    %490 = vmatprep.subr.mxu0 0.0
    %491 = vmatpush1.msra.mxu0 %v360
    %492 = vmatprep.subr.mxu0 0.0
    %493 = vmatpush1.msra.mxu0 %v363
    %494 = vmatprep.subr.mxu0 0.0
    %495 = vmatpush1.msra.mxu0 %v366
    %496 = vmatprep.subr.mxu0 0.0
    %497 = vmatpush1.msra.mxu0 %v369
    %498 = vmatprep.subr.mxu0 0.0
    %499 = vmatpush1.msra.mxu0 %v372
    %500 = vmatprep.subr.mxu0 0.0
    %501 = vmatpush1.msra.mxu0 %v375
    %502 = vmatprep.subr.mxu0 0.0
    %503 = vmatpush1.msra.mxu0 %v378
    %504 = vmatprep.subr.mxu0 0.0
    %505 = vmatpush1.msra.mxu0 %v381
    %506 = vmatprep.subr.mxu0 0.0
    %507 = vmatpush1.msra.mxu0 %v384
    %508 = vmatprep.subr.mxu0 0.0
    %509 = vmatpush1.msra.mxu0 %v387
    %510 = vmatprep.subr.mxu0 0.0
    %511 = vmatpush1.msra.mxu0 %v390
    %512 = vmatprep.subr.mxu0 0.0
    %513 = vmatpush1.msra.mxu0 0.0
    %514 = vmatprep.subr.mxu0 0.0
    %515 = vmatpush1.msra.mxu0 0.0
    %516 = vmatprep.subr.mxu0 0.0
    %517 = vmatpush1.msra.mxu0 0.0
    %518 = vmatprep.subr.mxu0 0.0
    %519 = vmatpush1.msra.mxu0 0.0
    %520 = vmatprep.subr.mxu0 0.0
    %521 = vmatpush1.msra.mxu0 0.0
    %522 = vmatprep.subr.mxu0 0.0
    %523 = vmatpush1.msra.mxu0 0.0
    %524 = vmatprep.subr.mxu0 0.0
    %525 = vmatpush1.msra.mxu0 0.0
    %526 = vmatprep.subr.mxu0 0.0
    %527 = vmatpush1.msra.mxu0 0.0
    %528 = vmatprep.subr.mxu0 0.0
    %529 = vmatpush1.msra.mxu0 0.0
    %530 = vmatprep.subr.mxu0 0.0
    %531 = vmatpush1.msra.mxu0 0.0
    %532 = vmatprep.subr.mxu0 0.0
    %533 = vmatpush1.msra.mxu0 0.0
    %534 = vmatprep.subr.mxu0 0.0
    %535 = vmatpush1.msra.mxu0 0.0
    %536 = vmatprep.subr.mxu0 0.0
    %537 = vmatpush1.msra.mxu0 0.0
    %538 = vmatprep.subr.mxu0 0.0
    %539 = vmatpush1.msra.mxu0 0.0
    %540 = vmatprep.subr.mxu0 0.0
    %541 = vmatpush1.msra.mxu0 0.0
    %542 = vmatprep.subr.mxu0 0.0
    %543 = vmatpush1.msra.mxu0 0.0
    %544 = vmatprep.mubr.f32.mxu0 0.0
    %545 = vmatmul.mubr.f32.gmra.mrb[0].mxu0 %v392
    %v546 = vpop.f32.mrb[0].mxu0
    %v547 = vadd.f32 %v405, %v546
    %v548 = vpop.f32.mrb[0].mxu0
    %549 = vdwg.mxu0
    %v550 = vadd.f32 %v269, %v476
    %v551 = vxor.u32 %v550, 2147483648
    %v552 = vmul.f32 %v551, 1.442695
    %v553 = vpow.pop %v552
    %v554 = vadd.f32 %v553, 1.0
    %v555 = vrcp.pop %v554
    %v556 = vmul.f32 1.0, %v555
    %v557 = vadd.f32 %v271, %v478
    %v558 = vxor.u32 %v557, 2147483648
    %v559 = vmul.f32 %v558, 1.442695
    %v560 = vpow.pop %v559
    %v561 = vadd.f32 %v560, 1.0
    %v562 = vrcp.pop %v561
    %v563 = vmul.f32 1.0, %v562
    %v564 = vmul.f32 %v556, %v547
    %v565 = vadd.f32 %v340, %v564
    %v566 = vtanh.pop %v565
    %v567 = vsub.f32 1.0, %v563
    %v568 = vmul.f32 %v567, %v566
    %v569 = vmul.f32 %v563, %v392
    %v570 = vadd.f32 %v568, %v569
    %571 = vst [vmem:[#allocation3] sm:$0x1] %v570
    %572 = vmatprep.subr.mxu0 %v344
    %573 = vmatpush1.msra.mxu0 %v343
    %574 = vmatprep.subr.mxu0 %v347
    %575 = vmatpush1.msra.mxu0 %v346
    %576 = vmatprep.subr.mxu0 %v350
    %577 = vmatpush1.msra.mxu0 %v349
    %578 = vmatprep.subr.mxu0 %v353
    %579 = vmatpush1.msra.mxu0 %v352
    %580 = vmatprep.subr.mxu0 %v356
    %581 = vmatpush1.msra.mxu0 %v355
    %582 = vmatprep.subr.mxu0 %v359
    %583 = vmatpush1.msra.mxu0 %v358
    %584 = vmatprep.subr.mxu0 %v362
    %585 = vmatpush1.msra.mxu0 %v361
    %586 = vmatprep.subr.mxu0 %v365
    %587 = vmatpush1.msra.mxu0 %v364
    %588 = vmatprep.subr.mxu0 %v368
    %589 = vmatpush1.msra.mxu0 %v367
    %590 = vmatprep.subr.mxu0 %v371
    %591 = vmatpush1.msra.mxu0 %v370
    %592 = vmatprep.subr.mxu0 %v374
    %593 = vmatpush1.msra.mxu0 %v373
    %594 = vmatprep.subr.mxu0 %v377
    %595 = vmatpush1.msra.mxu0 %v376
    %596 = vmatprep.subr.mxu0 %v380
    %597 = vmatpush1.msra.mxu0 %v379
    %598 = vmatprep.subr.mxu0 %v383
    %599 = vmatpush1.msra.mxu0 %v382
    %600 = vmatprep.subr.mxu0 %v386
    %601 = vmatpush1.msra.mxu0 %v385
    %602 = vmatprep.subr.mxu0 %v389
    %603 = vmatpush1.msra.mxu0 %v388
    %604 = vmatprep.subr.mxu0 0.0
    %605 = vmatpush1.msra.mxu0 0.0
    %606 = vmatprep.subr.mxu0 0.0
    %607 = vmatpush1.msra.mxu0 0.0
    %608 = vmatprep.subr.mxu0 0.0
    %609 = vmatpush1.msra.mxu0 0.0
    %610 = vmatprep.subr.mxu0 0.0
    %611 = vmatpush1.msra.mxu0 0.0
    %612 = vmatprep.subr.mxu0 0.0
    %613 = vmatpush1.msra.mxu0 0.0
    %614 = vmatprep.subr.mxu0 0.0
    %615 = vmatpush1.msra.mxu0 0.0
    %616 = vmatprep.subr.mxu0 0.0
    %617 = vmatpush1.msra.mxu0 0.0
    %618 = vmatprep.subr.mxu0 0.0
    %619 = vmatpush1.msra.mxu0 0.0
    %620 = vmatprep.subr.mxu0 0.0
    %621 = vmatpush1.msra.mxu0 0.0
    %622 = vmatprep.subr.mxu0 0.0
    %623 = vmatpush1.msra.mxu0 0.0
    %624 = vmatprep.subr.mxu0 0.0
    %625 = vmatpush1.msra.mxu0 0.0
    %626 = vmatprep.subr.mxu0 0.0
    %627 = vmatpush1.msra.mxu0 0.0
    %628 = vmatprep.subr.mxu0 0.0
    %629 = vmatpush1.msra.mxu0 0.0
    %630 = vmatprep.subr.mxu0 0.0
    %631 = vmatpush1.msra.mxu0 0.0
    %632 = vmatprep.subr.mxu0 0.0
    %633 = vmatpush1.msra.mxu0 0.0
    %634 = vmatprep.subr.mxu0 0.0
    %635 = vmatpush1.msra.mxu0 0.0
    %636 = vmatprep.mubr.f32.mxu0 0.0
    %637 = vmatmul.mubr.f32.gmra.mrb[0].mxu0 %v570
    %v638 = vpop.f32.mrb[0].mxu0
    %v639 = vadd.f32 %v397, %v638
    %v640 = vpop.f32.mrb[0].mxu0
    %v641 = vadd.f32 %v401, %v640
    %642 = vdwg.mxu0
    %643 = vmatprep.subr.mxu0 0.0
    %644 = vmatpush1.msra.mxu0 %v345
    %645 = vmatprep.subr.mxu0 0.0
    %646 = vmatpush1.msra.mxu0 %v348
    %647 = vmatprep.subr.mxu0 0.0
    %648 = vmatpush1.msra.mxu0 %v351
    %649 = vmatprep.subr.mxu0 0.0
    %650 = vmatpush1.msra.mxu0 %v354
    %651 = vmatprep.subr.mxu0 0.0
    %652 = vmatpush1.msra.mxu0 %v357
    %653 = vmatprep.subr.mxu0 0.0
    %654 = vmatpush1.msra.mxu0 %v360
    %655 = vmatprep.subr.mxu0 0.0
    %656 = vmatpush1.msra.mxu0 %v363
    %657 = vmatprep.subr.mxu0 0.0
    %658 = vmatpush1.msra.mxu0 %v366
    %659 = vmatprep.subr.mxu0 0.0
    %660 = vmatpush1.msra.mxu0 %v369
    %661 = vmatprep.subr.mxu0 0.0
    %662 = vmatpush1.msra.mxu0 %v372
    %663 = vmatprep.subr.mxu0 0.0
    %664 = vmatpush1.msra.mxu0 %v375
    %665 = vmatprep.subr.mxu0 0.0
    %666 = vmatpush1.msra.mxu0 %v378
    %667 = vmatprep.subr.mxu0 0.0
    %668 = vmatpush1.msra.mxu0 %v381
    %669 = vmatprep.subr.mxu0 0.0
    %670 = vmatpush1.msra.mxu0 %v384
    %671 = vmatprep.subr.mxu0 0.0
    %672 = vmatpush1.msra.mxu0 %v387
    %673 = vmatprep.subr.mxu0 0.0
    %674 = vmatpush1.msra.mxu0 %v390
    %675 = vmatprep.subr.mxu0 0.0
    %676 = vmatpush1.msra.mxu0 0.0
    %677 = vmatprep.subr.mxu0 0.0
    %678 = vmatpush1.msra.mxu0 0.0
    %679 = vmatprep.subr.mxu0 0.0
    %680 = vmatpush1.msra.mxu0 0.0
    %681 = vmatprep.subr.mxu0 0.0
    %682 = vmatpush1.msra.mxu0 0.0
    %683 = vmatprep.subr.mxu0 0.0
    %684 = vmatpush1.msra.mxu0 0.0
    %685 = vmatprep.subr.mxu0 0.0
    %686 = vmatpush1.msra.mxu0 0.0
    %687 = vmatprep.subr.mxu0 0.0
    %688 = vmatpush1.msra.mxu0 0.0
    %689 = vmatprep.subr.mxu0 0.0
    %690 = vmatpush1.msra.mxu0 0.0
    %691 = vmatprep.subr.mxu0 0.0
    %692 = vmatpush1.msra.mxu0 0.0
    %693 = vmatprep.subr.mxu0 0.0
    %694 = vmatpush1.msra.mxu0 0.0
    %695 = vmatprep.subr.mxu0 0.0
    %696 = vmatpush1.msra.mxu0 0.0
    %697 = vmatprep.subr.mxu0 0.0
    %698 = vmatpush1.msra.mxu0 0.0
    %699 = vmatprep.subr.mxu0 0.0
    %700 = vmatpush1.msra.mxu0 0.0
    %701 = vmatprep.subr.mxu0 0.0
    %702 = vmatpush1.msra.mxu0 0.0
    %703 = vmatprep.subr.mxu0 0.0
    %704 = vmatpush1.msra.mxu0 0.0
    %705 = vmatprep.subr.mxu0 0.0
    %706 = vmatpush1.msra.mxu0 0.0
    %707 = vmatprep.mubr.f32.mxu0 0.0
    %708 = vmatmul.mubr.f32.gmra.mrb[0].mxu0 %v570
    %v709 = vpop.f32.mrb[0].mxu0
    %v710 = vadd.f32 %v405, %v709
    %v711 = vpop.f32.mrb[0].mxu0
    %712 = vdwg.mxu0
    %v714 = vrot.slane %v639, 7
    %v716 = vadd.f32 %v269, %v714
    %v717 = vxor.u32 %v716, 2147483648
    %v718 = vmul.f32 %v717, 1.442695
    %v719 = vpow.pop %v718
    %v720 = vadd.f32 %v719, 1.0
    %v721 = vrcp.pop %v720
    %v722 = vmul.f32 1.0, %v721
    %v724 = vrot.slane %v641, 7
    %v726 = vadd.f32 %v271, %v724
    %v727 = vxor.u32 %v726, 2147483648
    %v728 = vmul.f32 %v727, 1.442695
    %v729 = vpow.pop %v728
    %v730 = vadd.f32 %v729, 1.0
    %v731 = vrcp.pop %v730
    %v732 = vmul.f32 1.0, %v731
    %v734 = vrot.slane %v710, 7
    %v736 = vmul.f32 %v722, %v734
    %v737 = vadd.f32 %v340, %v736
    %v738 = vtanh.pop %v737
    %v739 = vsub.f32 1.0, %v732
    %v740 = vmul.f32 %v739, %v738
    %v742 = vrot.slane %v570, 7
    %v744 = vmul.f32 %v732, %v742
    %v745 = vadd.f32 %v740, %v744
    %746 = vst [vmem:[#allocation3] sm:$0x2] %v745
    %v748 = vrot.slane %v745, 1
    %750 = vmatprep.subr.mxu0 %v344
    %751 = vmatpush1.msra.mxu0 %v343
    %752 = vmatprep.subr.mxu0 %v347
    %753 = vmatpush1.msra.mxu0 %v346
    %754 = vmatprep.subr.mxu0 %v350
    %755 = vmatpush1.msra.mxu0 %v349
    %756 = vmatprep.subr.mxu0 %v353
    %757 = vmatpush1.msra.mxu0 %v352
    %758 = vmatprep.subr.mxu0 %v356
    %759 = vmatpush1.msra.mxu0 %v355
    %760 = vmatprep.subr.mxu0 %v359
    %761 = vmatpush1.msra.mxu0 %v358
    %762 = vmatprep.subr.mxu0 %v362
    %763 = vmatpush1.msra.mxu0 %v361
    %764 = vmatprep.subr.mxu0 %v365
    %765 = vmatpush1.msra.mxu0 %v364
    %766 = vmatprep.subr.mxu0 %v368
    %767 = vmatpush1.msra.mxu0 %v367
    %768 = vmatprep.subr.mxu0 %v371
    %769 = vmatpush1.msra.mxu0 %v370
    %770 = vmatprep.subr.mxu0 %v374
    %771 = vmatpush1.msra.mxu0 %v373
    %772 = vmatprep.subr.mxu0 %v377
    %773 = vmatpush1.msra.mxu0 %v376
    %774 = vmatprep.subr.mxu0 %v380
    %775 = vmatpush1.msra.mxu0 %v379
    %776 = vmatprep.subr.mxu0 %v383
    %777 = vmatpush1.msra.mxu0 %v382
    %778 = vmatprep.subr.mxu0 %v386
    %779 = vmatpush1.msra.mxu0 %v385
    %780 = vmatprep.subr.mxu0 %v389
    %781 = vmatpush1.msra.mxu0 %v388
    %782 = vmatprep.subr.mxu0 0.0
    %783 = vmatpush1.msra.mxu0 0.0
    %784 = vmatprep.subr.mxu0 0.0
    %785 = vmatpush1.msra.mxu0 0.0
    %786 = vmatprep.subr.mxu0 0.0
    %787 = vmatpush1.msra.mxu0 0.0
    %788 = vmatprep.subr.mxu0 0.0
    %789 = vmatpush1.msra.mxu0 0.0
    %790 = vmatprep.subr.mxu0 0.0
    %791 = vmatpush1.msra.mxu0 0.0
    %792 = vmatprep.subr.mxu0 0.0
    %793 = vmatpush1.msra.mxu0 0.0
    %794 = vmatprep.subr.mxu0 0.0
    %795 = vmatpush1.msra.mxu0 0.0
    %796 = vmatprep.subr.mxu0 0.0
    %797 = vmatpush1.msra.mxu0 0.0
    %798 = vmatprep.subr.mxu0 0.0
    %799 = vmatpush1.msra.mxu0 0.0
    %800 = vmatprep.subr.mxu0 0.0
    %801 = vmatpush1.msra.mxu0 0.0
    %802 = vmatprep.subr.mxu0 0.0
    %803 = vmatpush1.msra.mxu0 0.0
    %804 = vmatprep.subr.mxu0 0.0
    %805 = vmatpush1.msra.mxu0 0.0
    %806 = vmatprep.subr.mxu0 0.0
    %807 = vmatpush1.msra.mxu0 0.0
    %808 = vmatprep.subr.mxu0 0.0
    %809 = vmatpush1.msra.mxu0 0.0
    %810 = vmatprep.subr.mxu0 0.0
    %811 = vmatpush1.msra.mxu0 0.0
    %812 = vmatprep.subr.mxu0 0.0
    %813 = vmatpush1.msra.mxu0 0.0
    %814 = vmatprep.mubr.f32.mxu0 0.0
    %815 = vmatmul.mubr.f32.gmra.mrb[0].mxu0 %v748
    %v816 = vpop.f32.mrb[0].mxu0
    %v817 = vadd.f32 %v397, %v816
    %v818 = vpop.f32.mrb[0].mxu0
    %v819 = vadd.f32 %v401, %v818
    %820 = vdwg.mxu0
    %821 = vmatprep.subr.mxu0 0.0
    %822 = vmatpush1.msra.mxu0 %v345
    %823 = vmatprep.subr.mxu0 0.0
    %824 = vmatpush1.msra.mxu0 %v348
    %825 = vmatprep.subr.mxu0 0.0
    %826 = vmatpush1.msra.mxu0 %v351
    %827 = vmatprep.subr.mxu0 0.0
    %828 = vmatpush1.msra.mxu0 %v354
    %829 = vmatprep.subr.mxu0 0.0
    %830 = vmatpush1.msra.mxu0 %v357
    %831 = vmatprep.subr.mxu0 0.0
    %832 = vmatpush1.msra.mxu0 %v360
    %833 = vmatprep.subr.mxu0 0.0
    %834 = vmatpush1.msra.mxu0 %v363
    %835 = vmatprep.subr.mxu0 0.0
    %836 = vmatpush1.msra.mxu0 %v366
    %837 = vmatprep.subr.mxu0 0.0
    %838 = vmatpush1.msra.mxu0 %v369
    %839 = vmatprep.subr.mxu0 0.0
    %840 = vmatpush1.msra.mxu0 %v372
    %841 = vmatprep.subr.mxu0 0.0
    %842 = vmatpush1.msra.mxu0 %v375
    %843 = vmatprep.subr.mxu0 0.0
    %844 = vmatpush1.msra.mxu0 %v378
    %845 = vmatprep.subr.mxu0 0.0
    %846 = vmatpush1.msra.mxu0 %v381
    %847 = vmatprep.subr.mxu0 0.0
    %848 = vmatpush1.msra.mxu0 %v384
    %849 = vmatprep.subr.mxu0 0.0
    %850 = vmatpush1.msra.mxu0 %v387
    %851 = vmatprep.subr.mxu0 0.0
    %852 = vmatpush1.msra.mxu0 %v390
    %853 = vmatprep.subr.mxu0 0.0
    %854 = vmatpush1.msra.mxu0 0.0
    %855 = vmatprep.subr.mxu0 0.0
    %856 = vmatpush1.msra.mxu0 0.0
    %857 = vmatprep.subr.mxu0 0.0
    %858 = vmatpush1.msra.mxu0 0.0
    %859 = vmatprep.subr.mxu0 0.0
    %860 = vmatpush1.msra.mxu0 0.0
    %861 = vmatprep.subr.mxu0 0.0
    %862 = vmatpush1.msra.mxu0 0.0
    %863 = vmatprep.subr.mxu0 0.0
    %864 = vmatpush1.msra.mxu0 0.0
    %865 = vmatprep.subr.mxu0 0.0
    %866 = vmatpush1.msra.mxu0 0.0
    %867 = vmatprep.subr.mxu0 0.0
    %868 = vmatpush1.msra.mxu0 0.0
    %869 = vmatprep.subr.mxu0 0.0
    %870 = vmatpush1.msra.mxu0 0.0
    %871 = vmatprep.subr.mxu0 0.0
    %872 = vmatpush1.msra.mxu0 0.0
    %873 = vmatprep.subr.mxu0 0.0
    %874 = vmatpush1.msra.mxu0 0.0
    %875 = vmatprep.subr.mxu0 0.0
    %876 = vmatpush1.msra.mxu0 0.0
    %877 = vmatprep.subr.mxu0 0.0
    %878 = vmatpush1.msra.mxu0 0.0
    %879 = vmatprep.subr.mxu0 0.0
    %880 = vmatpush1.msra.mxu0 0.0
    %881 = vmatprep.subr.mxu0 0.0
    %882 = vmatpush1.msra.mxu0 0.0
    %883 = vmatprep.subr.mxu0 0.0
    %884 = vmatpush1.msra.mxu0 0.0
    %885 = vmatprep.mubr.f32.mxu0 0.0
    %886 = vmatmul.mubr.f32.gmra.mrb[0].mxu0 %v748
    %v887 = vpop.f32.mrb[0].mxu0
    %v888 = vadd.f32 %v405, %v887
    %v889 = vpop.f32.mrb[0].mxu0
    %890 = vdwg.mxu0
    %v892 = vrot.slane %v817, 6
    %v894 = vadd.f32 %v269, %v892
    %v895 = vxor.u32 %v894, 2147483648
    %v896 = vmul.f32 %v895, 1.442695
    %v897 = vpow.pop %v896
    %v898 = vadd.f32 %v897, 1.0
    %v899 = vrcp.pop %v898
    %v900 = vmul.f32 1.0, %v899
    %v902 = vrot.slane %v819, 6
    %v904 = vadd.f32 %v271, %v902
    %v905 = vxor.u32 %v904, 2147483648
    %v906 = vmul.f32 %v905, 1.442695
    %v907 = vpow.pop %v906
    %v908 = vadd.f32 %v907, 1.0
    %v909 = vrcp.pop %v908
    %v910 = vmul.f32 1.0, %v909
    %v912 = vrot.slane %v888, 6
    %v914 = vmul.f32 %v900, %v912
    %v915 = vadd.f32 %v340, %v914
    %v916 = vtanh.pop %v915
    %v917 = vsub.f32 1.0, %v910
    %v918 = vmul.f32 %v917, %v916
    %v919 = vrot.slane %v745, 7
    %v921 = vmul.f32 %v910, %v919
    %v922 = vadd.f32 %v918, %v921
    %923 = vst [vmem:[#allocation3] sm:$0x4] %v922
    %v925 = vrot.slane %v922, 2
    %927 = vmatprep.subr.mxu0 %v344
    %928 = vmatpush1.msra.mxu0 %v343
    %929 = vmatprep.subr.mxu0 %v347
    %930 = vmatpush1.msra.mxu0 %v346
    %931 = vmatprep.subr.mxu0 %v350
    %932 = vmatpush1.msra.mxu0 %v349
    %933 = vmatprep.subr.mxu0 %v353
    %934 = vmatpush1.msra.mxu0 %v352
    %935 = vmatprep.subr.mxu0 %v356
    %936 = vmatpush1.msra.mxu0 %v355
    %937 = vmatprep.subr.mxu0 %v359
    %938 = vmatpush1.msra.mxu0 %v358
    %939 = vmatprep.subr.mxu0 %v362
    %940 = vmatpush1.msra.mxu0 %v361
    %941 = vmatprep.subr.mxu0 %v365
    %942 = vmatpush1.msra.mxu0 %v364
    %943 = vmatprep.subr.mxu0 %v368
    %944 = vmatpush1.msra.mxu0 %v367
    %945 = vmatprep.subr.mxu0 %v371
    %946 = vmatpush1.msra.mxu0 %v370
    %947 = vmatprep.subr.mxu0 %v374
    %948 = vmatpush1.msra.mxu0 %v373
    %949 = vmatprep.subr.mxu0 %v377
    %950 = vmatpush1.msra.mxu0 %v376
    %951 = vmatprep.subr.mxu0 %v380
    %952 = vmatpush1.msra.mxu0 %v379
    %953 = vmatprep.subr.mxu0 %v383
    %954 = vmatpush1.msra.mxu0 %v382
    %955 = vmatprep.subr.mxu0 %v386
    %956 = vmatpush1.msra.mxu0 %v385
    %957 = vmatprep.subr.mxu0 %v389
    %958 = vmatpush1.msra.mxu0 %v388
    %959 = vmatprep.subr.mxu0 0.0
    %960 = vmatpush1.msra.mxu0 0.0
    %961 = vmatprep.subr.mxu0 0.0
    %962 = vmatpush1.msra.mxu0 0.0
    %963 = vmatprep.subr.mxu0 0.0
    %964 = vmatpush1.msra.mxu0 0.0
    %965 = vmatprep.subr.mxu0 0.0
    %966 = vmatpush1.msra.mxu0 0.0
    %967 = vmatprep.subr.mxu0 0.0
    %968 = vmatpush1.msra.mxu0 0.0
    %969 = vmatprep.subr.mxu0 0.0
    %970 = vmatpush1.msra.mxu0 0.0
    %971 = vmatprep.subr.mxu0 0.0
    %972 = vmatpush1.msra.mxu0 0.0
    %973 = vmatprep.subr.mxu0 0.0
    %974 = vmatpush1.msra.mxu0 0.0
    %975 = vmatprep.subr.mxu0 0.0
    %976 = vmatpush1.msra.mxu0 0.0
    %977 = vmatprep.subr.mxu0 0.0
    %978 = vmatpush1.msra.mxu0 0.0
    %979 = vmatprep.subr.mxu0 0.0
    %980 = vmatpush1.msra.mxu0 0.0
    %981 = vmatprep.subr.mxu0 0.0
    %982 = vmatpush1.msra.mxu0 0.0
    %983 = vmatprep.subr.mxu0 0.0
    %984 = vmatpush1.msra.mxu0 0.0
    %985 = vmatprep.subr.mxu0 0.0
    %986 = vmatpush1.msra.mxu0 0.0
    %987 = vmatprep.subr.mxu0 0.0
    %988 = vmatpush1.msra.mxu0 0.0
    %989 = vmatprep.subr.mxu0 0.0
    %990 = vmatpush1.msra.mxu0 0.0
    %991 = vmatprep.mubr.f32.mxu0 0.0
    %992 = vmatmul.mubr.f32.gmra.mrb[0].mxu0 %v925
    %v993 = vpop.f32.mrb[0].mxu0
    %v994 = vadd.f32 %v397, %v993
    %v995 = vpop.f32.mrb[0].mxu0
    %v996 = vadd.f32 %v401, %v995
    %997 = vdwg.mxu0
    %998 = vmatprep.subr.mxu0 0.0
    %999 = vmatpush1.msra.mxu0 %v345
    %1000 = vmatprep.subr.mxu0 0.0
    %1001 = vmatpush1.msra.mxu0 %v348
    %1002 = vmatprep.subr.mxu0 0.0
    %1003 = vmatpush1.msra.mxu0 %v351
    %1004 = vmatprep.subr.mxu0 0.0
    %1005 = vmatpush1.msra.mxu0 %v354
    %1006 = vmatprep.subr.mxu0 0.0
    %1007 = vmatpush1.msra.mxu0 %v357
    %1008 = vmatprep.subr.mxu0 0.0
    %1009 = vmatpush1.msra.mxu0 %v360
    %1010 = vmatprep.subr.mxu0 0.0
    %1011 = vmatpush1.msra.mxu0 %v363
    %1012 = vmatprep.subr.mxu0 0.0
    %1013 = vmatpush1.msra.mxu0 %v366
    %1014 = vmatprep.subr.mxu0 0.0
    %1015 = vmatpush1.msra.mxu0 %v369
    %1016 = vmatprep.subr.mxu0 0.0
    %1017 = vmatpush1.msra.mxu0 %v372
    %1018 = vmatprep.subr.mxu0 0.0
    %1019 = vmatpush1.msra.mxu0 %v375
    %1020 = vmatprep.subr.mxu0 0.0
    %1021 = vmatpush1.msra.mxu0 %v378
    %1022 = vmatprep.subr.mxu0 0.0
    %1023 = vmatpush1.msra.mxu0 %v381
    %1024 = vmatprep.subr.mxu0 0.0
    %1025 = vmatpush1.msra.mxu0 %v384
    %1026 = vmatprep.subr.mxu0 0.0
    %1027 = vmatpush1.msra.mxu0 %v387
    %1028 = vmatprep.subr.mxu0 0.0
    %1029 = vmatpush1.msra.mxu0 %v390
    %1030 = vmatprep.subr.mxu0 0.0
    %1031 = vmatpush1.msra.mxu0 0.0
    %1032 = vmatprep.subr.mxu0 0.0
    %1033 = vmatpush1.msra.mxu0 0.0
    %1034 = vmatprep.subr.mxu0 0.0
    %1035 = vmatpush1.msra.mxu0 0.0
    %1036 = vmatprep.subr.mxu0 0.0
    %1037 = vmatpush1.msra.mxu0 0.0
    %1038 = vmatprep.subr.mxu0 0.0
    %1039 = vmatpush1.msra.mxu0 0.0
    %1040 = vmatprep.subr.mxu0 0.0
    %1041 = vmatpush1.msra.mxu0 0.0
    %1042 = vmatprep.subr.mxu0 0.0
    %1043 = vmatpush1.msra.mxu0 0.0
    %1044 = vmatprep.subr.mxu0 0.0
    %1045 = vmatpush1.msra.mxu0 0.0
    %1046 = vmatprep.subr.mxu0 0.0
    %1047 = vmatpush1.msra.mxu0 0.0
    %1048 = vmatprep.subr.mxu0 0.0
    %1049 = vmatpush1.msra.mxu0 0.0
    %1050 = vmatprep.subr.mxu0 0.0
    %1051 = vmatpush1.msra.mxu0 0.0
    %1052 = vmatprep.subr.mxu0 0.0
    %1053 = vmatpush1.msra.mxu0 0.0
    %1054 = vmatprep.subr.mxu0 0.0
    %1055 = vmatpush1.msra.mxu0 0.0
    %1056 = vmatprep.subr.mxu0 0.0
    %1057 = vmatpush1.msra.mxu0 0.0
    %1058 = vmatprep.subr.mxu0 0.0
    %1059 = vmatpush1.msra.mxu0 0.0
    %1060 = vmatprep.subr.mxu0 0.0
    %1061 = vmatpush1.msra.mxu0 0.0
    %1062 = vmatprep.mubr.f32.mxu0 0.0
    %1063 = vmatmul.mubr.f32.gmra.mrb[0].mxu0 %v925
    %v1064 = vpop.f32.mrb[0].mxu0
    %v1065 = vadd.f32 %v405, %v1064
    %v1066 = vpop.f32.mrb[0].mxu0
    %1067 = vdwg.mxu0
    %v1069 = vrot.slane %v994, 5
    %v1071 = vadd.f32 %v269, %v1069
    %v1072 = vxor.u32 %v1071, 2147483648
    %v1073 = vmul.f32 %v1072, 1.442695
    %v1074 = vpow.pop %v1073
    %v1075 = vadd.f32 %v1074, 1.0
    %v1076 = vrcp.pop %v1075
    %v1077 = vmul.f32 1.0, %v1076
    %v1079 = vrot.slane %v996, 5
    %v1081 = vadd.f32 %v271, %v1079
    %v1082 = vxor.u32 %v1081, 2147483648
    %v1083 = vmul.f32 %v1082, 1.442695
    %v1084 = vpow.pop %v1083
    %v1085 = vadd.f32 %v1084, 1.0
    %v1086 = vrcp.pop %v1085
    %v1087 = vmul.f32 1.0, %v1086
    %v1089 = vrot.slane %v1065, 5
    %v1091 = vmul.f32 %v1077, %v1089
    %v1092 = vadd.f32 %v340, %v1091
    %v1093 = vtanh.pop %v1092
    %v1094 = vsub.f32 1.0, %v1087
    %v1095 = vmul.f32 %v1094, %v1093
    %v1096 = vrot.slane %v922, 7
    %v1098 = vmul.f32 %v1087, %v1096
    %v1099 = vadd.f32 %v1095, %v1098
    %1100 = vst [vmem:[#allocation3] sm:$0x8] %v1099
    %v1102 = vrot.slane %v1099, 3
    %1104 = vmatprep.subr.mxu0 %v344
    %1105 = vmatpush1.msra.mxu0 %v343
    %1106 = vmatprep.subr.mxu0 %v347
    %1107 = vmatpush1.msra.mxu0 %v346
    %1108 = vmatprep.subr.mxu0 %v350
    %1109 = vmatpush1.msra.mxu0 %v349
    %1110 = vmatprep.subr.mxu0 %v353
    %1111 = vmatpush1.msra.mxu0 %v352
    %1112 = vmatprep.subr.mxu0 %v356
    %1113 = vmatpush1.msra.mxu0 %v355
    %1114 = vmatprep.subr.mxu0 %v359
    %1115 = vmatpush1.msra.mxu0 %v358
    %1116 = vmatprep.subr.mxu0 %v362
    %1117 = vmatpush1.msra.mxu0 %v361
    %1118 = vmatprep.subr.mxu0 %v365
    %1119 = vmatpush1.msra.mxu0 %v364
    %1120 = vmatprep.subr.mxu0 %v368
    %1121 = vmatpush1.msra.mxu0 %v367
    %1122 = vmatprep.subr.mxu0 %v371
    %1123 = vmatpush1.msra.mxu0 %v370
    %1124 = vmatprep.subr.mxu0 %v374
    %1125 = vmatpush1.msra.mxu0 %v373
    %1126 = vmatprep.subr.mxu0 %v377
    %1127 = vmatpush1.msra.mxu0 %v376
    %1128 = vmatprep.subr.mxu0 %v380
    %1129 = vmatpush1.msra.mxu0 %v379
    %1130 = vmatprep.subr.mxu0 %v383
    %1131 = vmatpush1.msra.mxu0 %v382
    %1132 = vmatprep.subr.mxu0 %v386
    %1133 = vmatpush1.msra.mxu0 %v385
    %1134 = vmatprep.subr.mxu0 %v389
    %1135 = vmatpush1.msra.mxu0 %v388
    %1136 = vmatprep.subr.mxu0 0.0
    %1137 = vmatpush1.msra.mxu0 0.0
    %1138 = vmatprep.subr.mxu0 0.0
    %1139 = vmatpush1.msra.mxu0 0.0
    %1140 = vmatprep.subr.mxu0 0.0
    %1141 = vmatpush1.msra.mxu0 0.0
    %1142 = vmatprep.subr.mxu0 0.0
    %1143 = vmatpush1.msra.mxu0 0.0
    %1144 = vmatprep.subr.mxu0 0.0
    %1145 = vmatpush1.msra.mxu0 0.0
    %1146 = vmatprep.subr.mxu0 0.0
    %1147 = vmatpush1.msra.mxu0 0.0
    %1148 = vmatprep.subr.mxu0 0.0
    %1149 = vmatpush1.msra.mxu0 0.0
    %1150 = vmatprep.subr.mxu0 0.0
    %1151 = vmatpush1.msra.mxu0 0.0
    %1152 = vmatprep.subr.mxu0 0.0
    %1153 = vmatpush1.msra.mxu0 0.0
    %1154 = vmatprep.subr.mxu0 0.0
    %1155 = vmatpush1.msra.mxu0 0.0
    %1156 = vmatprep.subr.mxu0 0.0
    %1157 = vmatpush1.msra.mxu0 0.0
    %1158 = vmatprep.subr.mxu0 0.0
    %1159 = vmatpush1.msra.mxu0 0.0
    %1160 = vmatprep.subr.mxu0 0.0
    %1161 = vmatpush1.msra.mxu0 0.0
    %1162 = vmatprep.subr.mxu0 0.0
    %1163 = vmatpush1.msra.mxu0 0.0
    %1164 = vmatprep.subr.mxu0 0.0
    %1165 = vmatpush1.msra.mxu0 0.0
    %1166 = vmatprep.subr.mxu0 0.0
    %1167 = vmatpush1.msra.mxu0 0.0
    %1168 = vmatprep.mubr.f32.mxu0 0.0
    %1169 = vmatmul.mubr.f32.gmra.mrb[0].mxu0 %v1102
    %v1170 = vpop.f32.mrb[0].mxu0
    %v1171 = vadd.f32 %v397, %v1170
    %v1172 = vpop.f32.mrb[0].mxu0
    %v1173 = vadd.f32 %v401, %v1172
    %1174 = vdwg.mxu0
    %1175 = vmatprep.subr.mxu0 0.0
    %1176 = vmatpush1.msra.mxu0 %v345
    %1177 = vmatprep.subr.mxu0 0.0
    %1178 = vmatpush1.msra.mxu0 %v348
    %1179 = vmatprep.subr.mxu0 0.0
    %1180 = vmatpush1.msra.mxu0 %v351
    %1181 = vmatprep.subr.mxu0 0.0
    %1182 = vmatpush1.msra.mxu0 %v354
    %1183 = vmatprep.subr.mxu0 0.0
    %1184 = vmatpush1.msra.mxu0 %v357
    %1185 = vmatprep.subr.mxu0 0.0
    %1186 = vmatpush1.msra.mxu0 %v360
    %1187 = vmatprep.subr.mxu0 0.0
    %1188 = vmatpush1.msra.mxu0 %v363
    %1189 = vmatprep.subr.mxu0 0.0
    %1190 = vmatpush1.msra.mxu0 %v366
    %1191 = vmatprep.subr.mxu0 0.0
    %1192 = vmatpush1.msra.mxu0 %v369
    %1193 = vmatprep.subr.mxu0 0.0
    %1194 = vmatpush1.msra.mxu0 %v372
    %1195 = vmatprep.subr.mxu0 0.0
    %1196 = vmatpush1.msra.mxu0 %v375
    %1197 = vmatprep.subr.mxu0 0.0
    %1198 = vmatpush1.msra.mxu0 %v378
    %1199 = vmatprep.subr.mxu0 0.0
    %1200 = vmatpush1.msra.mxu0 %v381
    %1201 = vmatprep.subr.mxu0 0.0
    %1202 = vmatpush1.msra.mxu0 %v384
    %1203 = vmatprep.subr.mxu0 0.0
    %1204 = vmatpush1.msra.mxu0 %v387
    %1205 = vmatprep.subr.mxu0 0.0
    %1206 = vmatpush1.msra.mxu0 %v390
    %1207 = vmatprep.subr.mxu0 0.0
    %1208 = vmatpush1.msra.mxu0 0.0
    %1209 = vmatprep.subr.mxu0 0.0
    %1210 = vmatpush1.msra.mxu0 0.0
    %1211 = vmatprep.subr.mxu0 0.0
    %1212 = vmatpush1.msra.mxu0 0.0
    %1213 = vmatprep.subr.mxu0 0.0
    %1214 = vmatpush1.msra.mxu0 0.0
    %1215 = vmatprep.subr.mxu0 0.0
    %1216 = vmatpush1.msra.mxu0 0.0
    %1217 = vmatprep.subr.mxu0 0.0
    %1218 = vmatpush1.msra.mxu0 0.0
    %1219 = vmatprep.subr.mxu0 0.0
    %1220 = vmatpush1.msra.mxu0 0.0
    %1221 = vmatprep.subr.mxu0 0.0
    %1222 = vmatpush1.msra.mxu0 0.0
    %1223 = vmatprep.subr.mxu0 0.0
    %1224 = vmatpush1.msra.mxu0 0.0
    %1225 = vmatprep.subr.mxu0 0.0
    %1226 = vmatpush1.msra.mxu0 0.0
    %1227 = vmatprep.subr.mxu0 0.0
    %1228 = vmatpush1.msra.mxu0 0.0
    %1229 = vmatprep.subr.mxu0 0.0
    %1230 = vmatpush1.msra.mxu0 0.0
    %1231 = vmatprep.subr.mxu0 0.0
    %1232 = vmatpush1.msra.mxu0 0.0
    %1233 = vmatprep.subr.mxu0 0.0
    %1234 = vmatpush1.msra.mxu0 0.0
    %1235 = vmatprep.subr.mxu0 0.0
    %1236 = vmatpush1.msra.mxu0 0.0
    %1237 = vmatprep.subr.mxu0 0.0
    %1238 = vmatpush1.msra.mxu0 0.0
    %1239 = vmatprep.mubr.f32.mxu0 0.0
    %1240 = vmatmul.mubr.f32.gmra.mrb[0].mxu0 %v1102
    %v1241 = vpop.f32.mrb[0].mxu0
    %v1242 = vadd.f32 %v405, %v1241
    %v1243 = vpop.f32.mrb[0].mxu0
    %1244 = vdwg.mxu0
    %v1246 = vrot.slane %v1171, 4
    %v1248 = vadd.f32 %v269, %v1246
    %v1249 = vxor.u32 %v1248, 2147483648
    %v1250 = vmul.f32 %v1249, 1.442695
    %v1251 = vpow.pop %v1250
    %v1252 = vadd.f32 %v1251, 1.0
    %v1253 = vrcp.pop %v1252
    %v1254 = vmul.f32 1.0, %v1253
    %v1256 = vrot.slane %v1173, 4
    %v1258 = vadd.f32 %v271, %v1256
    %v1259 = vxor.u32 %v1258, 2147483648
    %v1260 = vmul.f32 %v1259, 1.442695
    %v1261 = vpow.pop %v1260
    %v1262 = vadd.f32 %v1261, 1.0
    %v1263 = vrcp.pop %v1262
    %v1264 = vmul.f32 1.0, %v1263
    %v1266 = vrot.slane %v1242, 4
    %v1268 = vmul.f32 %v1254, %v1266
    %v1269 = vadd.f32 %v340, %v1268
    %v1270 = vtanh.pop %v1269
    %v1271 = vsub.f32 1.0, %v1264
    %v1272 = vmul.f32 %v1271, %v1270
    %v1273 = vrot.slane %v1099, 7
    %v1275 = vmul.f32 %v1264, %v1273
    %v1276 = vadd.f32 %v1272, %v1275
    %1277 = vst [vmem:[#allocation3] sm:$0x10] %v1276
    %v1279 = vrot.slane %v1276, 4
    %1281 = vmatprep.subr.mxu0 %v344
    %1282 = vmatpush1.msra.mxu0 %v343
    %1283 = vmatprep.subr.mxu0 %v347
    %1284 = vmatpush1.msra.mxu0 %v346
    %1285 = vmatprep.subr.mxu0 %v350
    %1286 = vmatpush1.msra.mxu0 %v349
    %1287 = vmatprep.subr.mxu0 %v353
    %1288 = vmatpush1.msra.mxu0 %v352
    %1289 = vmatprep.subr.mxu0 %v356
    %1290 = vmatpush1.msra.mxu0 %v355
    %1291 = vmatprep.subr.mxu0 %v359
    %1292 = vmatpush1.msra.mxu0 %v358
    %1293 = vmatprep.subr.mxu0 %v362
    %1294 = vmatpush1.msra.mxu0 %v361
    %1295 = vmatprep.subr.mxu0 %v365
    %1296 = vmatpush1.msra.mxu0 %v364
    %1297 = vmatprep.subr.mxu0 %v368
    %1298 = vmatpush1.msra.mxu0 %v367
    %1299 = vmatprep.subr.mxu0 %v371
    %1300 = vmatpush1.msra.mxu0 %v370
    %1301 = vmatprep.subr.mxu0 %v374
    %1302 = vmatpush1.msra.mxu0 %v373
    %1303 = vmatprep.subr.mxu0 %v377
    %1304 = vmatpush1.msra.mxu0 %v376
    %1305 = vmatprep.subr.mxu0 %v380
    %1306 = vmatpush1.msra.mxu0 %v379
    %1307 = vmatprep.subr.mxu0 %v383
    %1308 = vmatpush1.msra.mxu0 %v382
    %1309 = vmatprep.subr.mxu0 %v386
    %1310 = vmatpush1.msra.mxu0 %v385
    %1311 = vmatprep.subr.mxu0 %v389
    %1312 = vmatpush1.msra.mxu0 %v388
    %1313 = vmatprep.subr.mxu0 0.0
    %1314 = vmatpush1.msra.mxu0 0.0
    %1315 = vmatprep.subr.mxu0 0.0
    %1316 = vmatpush1.msra.mxu0 0.0
    %1317 = vmatprep.subr.mxu0 0.0
    %1318 = vmatpush1.msra.mxu0 0.0
    %1319 = vmatprep.subr.mxu0 0.0
    %1320 = vmatpush1.msra.mxu0 0.0
    %1321 = vmatprep.subr.mxu0 0.0
    %1322 = vmatpush1.msra.mxu0 0.0
    %1323 = vmatprep.subr.mxu0 0.0
    %1324 = vmatpush1.msra.mxu0 0.0
    %1325 = vmatprep.subr.mxu0 0.0
    %1326 = vmatpush1.msra.mxu0 0.0
    %1327 = vmatprep.subr.mxu0 0.0
    %1328 = vmatpush1.msra.mxu0 0.0
    %1329 = vmatprep.subr.mxu0 0.0
    %1330 = vmatpush1.msra.mxu0 0.0
    %1331 = vmatprep.subr.mxu0 0.0
    %1332 = vmatpush1.msra.mxu0 0.0
    %1333 = vmatprep.subr.mxu0 0.0
    %1334 = vmatpush1.msra.mxu0 0.0
    %1335 = vmatprep.subr.mxu0 0.0
    %1336 = vmatpush1.msra.mxu0 0.0
    %1337 = vmatprep.subr.mxu0 0.0
    %1338 = vmatpush1.msra.mxu0 0.0
    %1339 = vmatprep.subr.mxu0 0.0
    %1340 = vmatpush1.msra.mxu0 0.0
    %1341 = vmatprep.subr.mxu0 0.0
    %1342 = vmatpush1.msra.mxu0 0.0
    %1343 = vmatprep.subr.mxu0 0.0
    %1344 = vmatpush1.msra.mxu0 0.0
    %1345 = vmatprep.mubr.f32.mxu0 0.0
    %1346 = vmatmul.mubr.f32.gmra.mrb[0].mxu0 %v1279
    %v1347 = vpop.f32.mrb[0].mxu0
    %v1348 = vadd.f32 %v397, %v1347
    %v1349 = vpop.f32.mrb[0].mxu0
    %v1350 = vadd.f32 %v401, %v1349
    %1351 = vdwg.mxu0
    %1352 = vmatprep.subr.mxu0 0.0
    %1353 = vmatpush1.msra.mxu0 %v345
    %1354 = vmatprep.subr.mxu0 0.0
    %1355 = vmatpush1.msra.mxu0 %v348
    %1356 = vmatprep.subr.mxu0 0.0
    %1357 = vmatpush1.msra.mxu0 %v351
    %1358 = vmatprep.subr.mxu0 0.0
    %1359 = vmatpush1.msra.mxu0 %v354
    %1360 = vmatprep.subr.mxu0 0.0
    %1361 = vmatpush1.msra.mxu0 %v357
    %1362 = vmatprep.subr.mxu0 0.0
    %1363 = vmatpush1.msra.mxu0 %v360
    %1364 = vmatprep.subr.mxu0 0.0
    %1365 = vmatpush1.msra.mxu0 %v363
    %1366 = vmatprep.subr.mxu0 0.0
    %1367 = vmatpush1.msra.mxu0 %v366
    %1368 = vmatprep.subr.mxu0 0.0
    %1369 = vmatpush1.msra.mxu0 %v369
    %1370 = vmatprep.subr.mxu0 0.0
    %1371 = vmatpush1.msra.mxu0 %v372
    %1372 = vmatprep.subr.mxu0 0.0
    %1373 = vmatpush1.msra.mxu0 %v375
    %1374 = vmatprep.subr.mxu0 0.0
    %1375 = vmatpush1.msra.mxu0 %v378
    %1376 = vmatprep.subr.mxu0 0.0
    %1377 = vmatpush1.msra.mxu0 %v381
    %1378 = vmatprep.subr.mxu0 0.0
    %1379 = vmatpush1.msra.mxu0 %v384
    %1380 = vmatprep.subr.mxu0 0.0
    %1381 = vmatpush1.msra.mxu0 %v387
    %1382 = vmatprep.subr.mxu0 0.0
    %1383 = vmatpush1.msra.mxu0 %v390
    %1384 = vmatprep.subr.mxu0 0.0
    %1385 = vmatpush1.msra.mxu0 0.0
    %1386 = vmatprep.subr.mxu0 0.0
    %1387 = vmatpush1.msra.mxu0 0.0
    %1388 = vmatprep.subr.mxu0 0.0
    %1389 = vmatpush1.msra.mxu0 0.0
    %1390 = vmatprep.subr.mxu0 0.0
    %1391 = vmatpush1.msra.mxu0 0.0
    %1392 = vmatprep.subr.mxu0 0.0
    %1393 = vmatpush1.msra.mxu0 0.0
    %1394 = vmatprep.subr.mxu0 0.0
    %1395 = vmatpush1.msra.mxu0 0.0
    %1396 = vmatprep.subr.mxu0 0.0
    %1397 = vmatpush1.msra.mxu0 0.0
    %1398 = vmatprep.subr.mxu0 0.0
    %1399 = vmatpush1.msra.mxu0 0.0
    %1400 = vmatprep.subr.mxu0 0.0
    %1401 = vmatpush1.msra.mxu0 0.0
    %1402 = vmatprep.subr.mxu0 0.0
    %1403 = vmatpush1.msra.mxu0 0.0
    %1404 = vmatprep.subr.mxu0 0.0
    %1405 = vmatpush1.msra.mxu0 0.0
    %1406 = vmatprep.subr.mxu0 0.0
    %1407 = vmatpush1.msra.mxu0 0.0
    %1408 = vmatprep.subr.mxu0 0.0
    %1409 = vmatpush1.msra.mxu0 0.0
    %1410 = vmatprep.subr.mxu0 0.0
    %1411 = vmatpush1.msra.mxu0 0.0
    %1412 = vmatprep.subr.mxu0 0.0
    %1413 = vmatpush1.msra.mxu0 0.0
    %1414 = vmatprep.subr.mxu0 0.0
    %1415 = vmatpush1.msra.mxu0 0.0
    %1416 = vmatprep.mubr.f32.mxu0 0.0
    %1417 = vmatmul.mubr.f32.gmra.mrb[0].mxu0 %v1279
    %v1418 = vpop.f32.mrb[0].mxu0
    %v1419 = vadd.f32 %v405, %v1418
    %v1420 = vpop.f32.mrb[0].mxu0
    %1421 = vdwg.mxu0
    %v1423 = vrot.slane %v1348, 3
    %v1425 = vadd.f32 %v269, %v1423
    %v1426 = vxor.u32 %v1425, 2147483648
    %v1427 = vmul.f32 %v1426, 1.442695
    %v1428 = vpow.pop %v1427
    %v1429 = vadd.f32 %v1428, 1.0
    %v1430 = vrcp.pop %v1429
    %v1431 = vmul.f32 1.0, %v1430
    %v1433 = vrot.slane %v1350, 3
    %v1435 = vadd.f32 %v271, %v1433
    %v1436 = vxor.u32 %v1435, 2147483648
    %v1437 = vmul.f32 %v1436, 1.442695
    %v1438 = vpow.pop %v1437
    %v1439 = vadd.f32 %v1438, 1.0
    %v1440 = vrcp.pop %v1439
    %v1441 = vmul.f32 1.0, %v1440
    %v1443 = vrot.slane %v1419, 3
    %v1445 = vmul.f32 %v1431, %v1443
    %v1446 = vadd.f32 %v340, %v1445
    %v1447 = vtanh.pop %v1446
    %v1448 = vsub.f32 1.0, %v1441
    %v1449 = vmul.f32 %v1448, %v1447
    %v1450 = vrot.slane %v1276, 7
    %v1452 = vmul.f32 %v1441, %v1450
    %v1453 = vadd.f32 %v1449, %v1452
    %1454 = vst [vmem:[#allocation3] sm:$0x20] %v1453
    %v1456 = vrot.slane %v1453, 5
    %1458 = vmatprep.subr.mxu0 %v344
    %1459 = vmatpush1.msra.mxu0 %v343
    %1460 = vmatprep.subr.mxu0 %v347
    %1461 = vmatpush1.msra.mxu0 %v346
    %1462 = vmatprep.subr.mxu0 %v350
    %1463 = vmatpush1.msra.mxu0 %v349
    %1464 = vmatprep.subr.mxu0 %v353
    %1465 = vmatpush1.msra.mxu0 %v352
    %1466 = vmatprep.subr.mxu0 %v356
    %1467 = vmatpush1.msra.mxu0 %v355
    %1468 = vmatprep.subr.mxu0 %v359
    %1469 = vmatpush1.msra.mxu0 %v358
    %1470 = vmatprep.subr.mxu0 %v362
    %1471 = vmatpush1.msra.mxu0 %v361
    %1472 = vmatprep.subr.mxu0 %v365
    %1473 = vmatpush1.msra.mxu0 %v364
    %1474 = vmatprep.subr.mxu0 %v368
    %1475 = vmatpush1.msra.mxu0 %v367
    %1476 = vmatprep.subr.mxu0 %v371
    %1477 = vmatpush1.msra.mxu0 %v370
    %1478 = vmatprep.subr.mxu0 %v374
    %1479 = vmatpush1.msra.mxu0 %v373
    %1480 = vmatprep.subr.mxu0 %v377
    %1481 = vmatpush1.msra.mxu0 %v376
    %1482 = vmatprep.subr.mxu0 %v380
    %1483 = vmatpush1.msra.mxu0 %v379
    %1484 = vmatprep.subr.mxu0 %v383
    %1485 = vmatpush1.msra.mxu0 %v382
    %1486 = vmatprep.subr.mxu0 %v386
    %1487 = vmatpush1.msra.mxu0 %v385
    %1488 = vmatprep.subr.mxu0 %v389
    %1489 = vmatpush1.msra.mxu0 %v388
    %1490 = vmatprep.subr.mxu0 0.0
    %1491 = vmatpush1.msra.mxu0 0.0
    %1492 = vmatprep.subr.mxu0 0.0
    %1493 = vmatpush1.msra.mxu0 0.0
    %1494 = vmatprep.subr.mxu0 0.0
    %1495 = vmatpush1.msra.mxu0 0.0
    %1496 = vmatprep.subr.mxu0 0.0
    %1497 = vmatpush1.msra.mxu0 0.0
    %1498 = vmatprep.subr.mxu0 0.0
    %1499 = vmatpush1.msra.mxu0 0.0
    %1500 = vmatprep.subr.mxu0 0.0
    %1501 = vmatpush1.msra.mxu0 0.0
    %1502 = vmatprep.subr.mxu0 0.0
    %1503 = vmatpush1.msra.mxu0 0.0
    %1504 = vmatprep.subr.mxu0 0.0
    %1505 = vmatpush1.msra.mxu0 0.0
    %1506 = vmatprep.subr.mxu0 0.0
    %1507 = vmatpush1.msra.mxu0 0.0
    %1508 = vmatprep.subr.mxu0 0.0
    %1509 = vmatpush1.msra.mxu0 0.0
    %1510 = vmatprep.subr.mxu0 0.0
    %1511 = vmatpush1.msra.mxu0 0.0
    %1512 = vmatprep.subr.mxu0 0.0
    %1513 = vmatpush1.msra.mxu0 0.0
    %1514 = vmatprep.subr.mxu0 0.0
    %1515 = vmatpush1.msra.mxu0 0.0
    %1516 = vmatprep.subr.mxu0 0.0
    %1517 = vmatpush1.msra.mxu0 0.0
    %1518 = vmatprep.subr.mxu0 0.0
    %1519 = vmatpush1.msra.mxu0 0.0
    %1520 = vmatprep.subr.mxu0 0.0
    %1521 = vmatpush1.msra.mxu0 0.0
    %1522 = vmatprep.mubr.f32.mxu0 0.0
    %1523 = vmatmul.mubr.f32.gmra.mrb[0].mxu0 %v1456
    %v1524 = vpop.f32.mrb[0].mxu0
    %v1525 = vadd.f32 %v397, %v1524
    %v1526 = vpop.f32.mrb[0].mxu0
    %v1527 = vadd.f32 %v401, %v1526
    %1528 = vdwg.mxu0
    %1529 = vmatprep.subr.mxu0 0.0
    %1530 = vmatpush1.msra.mxu0 %v345
    %1531 = vmatprep.subr.mxu0 0.0
    %1532 = vmatpush1.msra.mxu0 %v348
    %1533 = vmatprep.subr.mxu0 0.0
    %1534 = vmatpush1.msra.mxu0 %v351
    %1535 = vmatprep.subr.mxu0 0.0
    %1536 = vmatpush1.msra.mxu0 %v354
    %1537 = vmatprep.subr.mxu0 0.0
    %1538 = vmatpush1.msra.mxu0 %v357
    %1539 = vmatprep.subr.mxu0 0.0
    %1540 = vmatpush1.msra.mxu0 %v360
    %1541 = vmatprep.subr.mxu0 0.0
    %1542 = vmatpush1.msra.mxu0 %v363
    %1543 = vmatprep.subr.mxu0 0.0
    %1544 = vmatpush1.msra.mxu0 %v366
    %1545 = vmatprep.subr.mxu0 0.0
    %1546 = vmatpush1.msra.mxu0 %v369
    %1547 = vmatprep.subr.mxu0 0.0
    %1548 = vmatpush1.msra.mxu0 %v372
    %1549 = vmatprep.subr.mxu0 0.0
    %1550 = vmatpush1.msra.mxu0 %v375
    %1551 = vmatprep.subr.mxu0 0.0
    %1552 = vmatpush1.msra.mxu0 %v378
    %1553 = vmatprep.subr.mxu0 0.0
    %1554 = vmatpush1.msra.mxu0 %v381
    %1555 = vmatprep.subr.mxu0 0.0
    %1556 = vmatpush1.msra.mxu0 %v384
    %1557 = vmatprep.subr.mxu0 0.0
    %1558 = vmatpush1.msra.mxu0 %v387
    %1559 = vmatprep.subr.mxu0 0.0
    %1560 = vmatpush1.msra.mxu0 %v390
    %1561 = vmatprep.subr.mxu0 0.0
    %1562 = vmatpush1.msra.mxu0 0.0
    %1563 = vmatprep.subr.mxu0 0.0
    %1564 = vmatpush1.msra.mxu0 0.0
    %1565 = vmatprep.subr.mxu0 0.0
    %1566 = vmatpush1.msra.mxu0 0.0
    %1567 = vmatprep.subr.mxu0 0.0
    %1568 = vmatpush1.msra.mxu0 0.0
    %1569 = vmatprep.subr.mxu0 0.0
    %1570 = vmatpush1.msra.mxu0 0.0
    %1571 = vmatprep.subr.mxu0 0.0
    %1572 = vmatpush1.msra.mxu0 0.0
    %1573 = vmatprep.subr.mxu0 0.0
    %1574 = vmatpush1.msra.mxu0 0.0
    %1575 = vmatprep.subr.mxu0 0.0
    %1576 = vmatpush1.msra.mxu0 0.0
    %1577 = vmatprep.subr.mxu0 0.0
    %1578 = vmatpush1.msra.mxu0 0.0
    %1579 = vmatprep.subr.mxu0 0.0
    %1580 = vmatpush1.msra.mxu0 0.0
    %1581 = vmatprep.subr.mxu0 0.0
    %1582 = vmatpush1.msra.mxu0 0.0
    %1583 = vmatprep.subr.mxu0 0.0
    %1584 = vmatpush1.msra.mxu0 0.0
    %1585 = vmatprep.subr.mxu0 0.0
    %1586 = vmatpush1.msra.mxu0 0.0
    %1587 = vmatprep.subr.mxu0 0.0
    %1588 = vmatpush1.msra.mxu0 0.0
    %1589 = vmatprep.subr.mxu0 0.0
    %1590 = vmatpush1.msra.mxu0 0.0
    %1591 = vmatprep.subr.mxu0 0.0
    %1592 = vmatpush1.msra.mxu0 0.0
    %1593 = vmatprep.mubr.f32.mxu0 0.0
    %1594 = vmatmul.mubr.f32.gmra.mrb[0].mxu0 %v1456
    %v1595 = vpop.f32.mrb[0].mxu0
    %v1596 = vadd.f32 %v405, %v1595
    %v1597 = vpop.f32.mrb[0].mxu0
    %1598 = vdwg.mxu0
    %v1600 = vrot.slane %v1525, 2
    %v1602 = vadd.f32 %v269, %v1600
    %v1603 = vxor.u32 %v1602, 2147483648
    %v1604 = vmul.f32 %v1603, 1.442695
    %v1605 = vpow.pop %v1604
    %v1606 = vadd.f32 %v1605, 1.0
    %v1607 = vrcp.pop %v1606
    %v1608 = vmul.f32 1.0, %v1607
    %v1610 = vrot.slane %v1527, 2
    %v1612 = vadd.f32 %v271, %v1610
    %v1613 = vxor.u32 %v1612, 2147483648
    %v1614 = vmul.f32 %v1613, 1.442695
    %v1615 = vpow.pop %v1614
    %v1616 = vadd.f32 %v1615, 1.0
    %v1617 = vrcp.pop %v1616
    %v1618 = vmul.f32 1.0, %v1617
    %v1620 = vrot.slane %v1596, 2
    %v1622 = vmul.f32 %v1608, %v1620
    %v1623 = vadd.f32 %v340, %v1622
    %v1624 = vtanh.pop %v1623
    %v1625 = vsub.f32 1.0, %v1618
    %v1626 = vmul.f32 %v1625, %v1624
    %v1627 = vrot.slane %v1453, 7
    %v1629 = vmul.f32 %v1618, %v1627
    %v1630 = vadd.f32 %v1626, %v1629
    %1631 = vst [vmem:[#allocation3] sm:$0x40] %v1630
    %v1633 = vrot.slane %v1630, 6
    %1635 = vmatprep.subr.mxu0 %v344
    %1636 = vmatpush1.msra.mxu0 %v343
    %1637 = vmatprep.subr.mxu0 %v347
    %1638 = vmatpush1.msra.mxu0 %v346
    %1639 = vmatprep.subr.mxu0 %v350
    %1640 = vmatpush1.msra.mxu0 %v349
    %1641 = vmatprep.subr.mxu0 %v353
    %1642 = vmatpush1.msra.mxu0 %v352
    %1643 = vmatprep.subr.mxu0 %v356
    %1644 = vmatpush1.msra.mxu0 %v355
    %1645 = vmatprep.subr.mxu0 %v359
    %1646 = vmatpush1.msra.mxu0 %v358
    %1647 = vmatprep.subr.mxu0 %v362
    %1648 = vmatpush1.msra.mxu0 %v361
    %1649 = vmatprep.subr.mxu0 %v365
    %1650 = vmatpush1.msra.mxu0 %v364
    %1651 = vmatprep.subr.mxu0 %v368
    %1652 = vmatpush1.msra.mxu0 %v367
    %1653 = vmatprep.subr.mxu0 %v371
    %1654 = vmatpush1.msra.mxu0 %v370
    %1655 = vmatprep.subr.mxu0 %v374
    %1656 = vmatpush1.msra.mxu0 %v373
    %1657 = vmatprep.subr.mxu0 %v377
    %1658 = vmatpush1.msra.mxu0 %v376
    %1659 = vmatprep.subr.mxu0 %v380
    %1660 = vmatpush1.msra.mxu0 %v379
    %1661 = vmatprep.subr.mxu0 %v383
    %1662 = vmatpush1.msra.mxu0 %v382
    %1663 = vmatprep.subr.mxu0 %v386
    %1664 = vmatpush1.msra.mxu0 %v385
    %1665 = vmatprep.subr.mxu0 %v389
    %1666 = vmatpush1.msra.mxu0 %v388
    %1667 = vmatprep.subr.mxu0 0.0
    %1668 = vmatpush1.msra.mxu0 0.0
    %1669 = vmatprep.subr.mxu0 0.0
    %1670 = vmatpush1.msra.mxu0 0.0
    %1671 = vmatprep.subr.mxu0 0.0
    %1672 = vmatpush1.msra.mxu0 0.0
    %1673 = vmatprep.subr.mxu0 0.0
    %1674 = vmatpush1.msra.mxu0 0.0
    %1675 = vmatprep.subr.mxu0 0.0
    %1676 = vmatpush1.msra.mxu0 0.0
    %1677 = vmatprep.subr.mxu0 0.0
    %1678 = vmatpush1.msra.mxu0 0.0
    %1679 = vmatprep.subr.mxu0 0.0
    %1680 = vmatpush1.msra.mxu0 0.0
    %1681 = vmatprep.subr.mxu0 0.0
    %1682 = vmatpush1.msra.mxu0 0.0
    %1683 = vmatprep.subr.mxu0 0.0
    %1684 = vmatpush1.msra.mxu0 0.0
    %1685 = vmatprep.subr.mxu0 0.0
    %1686 = vmatpush1.msra.mxu0 0.0
    %1687 = vmatprep.subr.mxu0 0.0
    %1688 = vmatpush1.msra.mxu0 0.0
    %1689 = vmatprep.subr.mxu0 0.0
    %1690 = vmatpush1.msra.mxu0 0.0
    %1691 = vmatprep.subr.mxu0 0.0
    %1692 = vmatpush1.msra.mxu0 0.0
    %1693 = vmatprep.subr.mxu0 0.0
    %1694 = vmatpush1.msra.mxu0 0.0
    %1695 = vmatprep.subr.mxu0 0.0
    %1696 = vmatpush1.msra.mxu0 0.0
    %1697 = vmatprep.subr.mxu0 0.0
    %1698 = vmatpush1.msra.mxu0 0.0
    %1699 = vmatprep.mubr.f32.mxu0 0.0
    %1700 = vmatmul.mubr.f32.gmra.mrb[0].mxu0 %v1633
    %v1701 = vpop.f32.mrb[0].mxu0
    %v1702 = vadd.f32 %v397, %v1701
    %v1703 = vpop.f32.mrb[0].mxu0
    %v1704 = vadd.f32 %v401, %v1703
    %1705 = vdwg.mxu0
    %1706 = vmatprep.subr.mxu0 0.0
    %1707 = vmatpush1.msra.mxu0 %v345
    %1708 = vmatprep.subr.mxu0 0.0
    %1709 = vmatpush1.msra.mxu0 %v348
    %1710 = vmatprep.subr.mxu0 0.0
    %1711 = vmatpush1.msra.mxu0 %v351
    %1712 = vmatprep.subr.mxu0 0.0
    %1713 = vmatpush1.msra.mxu0 %v354
    %1714 = vmatprep.subr.mxu0 0.0
    %1715 = vmatpush1.msra.mxu0 %v357
    %1716 = vmatprep.subr.mxu0 0.0
    %1717 = vmatpush1.msra.mxu0 %v360
    %1718 = vmatprep.subr.mxu0 0.0
    %1719 = vmatpush1.msra.mxu0 %v363
    %1720 = vmatprep.subr.mxu0 0.0
    %1721 = vmatpush1.msra.mxu0 %v366
    %1722 = vmatprep.subr.mxu0 0.0
    %1723 = vmatpush1.msra.mxu0 %v369
    %1724 = vmatprep.subr.mxu0 0.0
    %1725 = vmatpush1.msra.mxu0 %v372
    %1726 = vmatprep.subr.mxu0 0.0
    %1727 = vmatpush1.msra.mxu0 %v375
    %1728 = vmatprep.subr.mxu0 0.0
    %1729 = vmatpush1.msra.mxu0 %v378
    %1730 = vmatprep.subr.mxu0 0.0
    %1731 = vmatpush1.msra.mxu0 %v381
    %1732 = vmatprep.subr.mxu0 0.0
    %1733 = vmatpush1.msra.mxu0 %v384
    %1734 = vmatprep.subr.mxu0 0.0
    %1735 = vmatpush1.msra.mxu0 %v387
    %1736 = vmatprep.subr.mxu0 0.0
    %1737 = vmatpush1.msra.mxu0 %v390
    %1738 = vmatprep.subr.mxu0 0.0
    %1739 = vmatpush1.msra.mxu0 0.0
    %1740 = vmatprep.subr.mxu0 0.0
    %1741 = vmatpush1.msra.mxu0 0.0
    %1742 = vmatprep.subr.mxu0 0.0
    %1743 = vmatpush1.msra.mxu0 0.0
    %1744 = vmatprep.subr.mxu0 0.0
    %1745 = vmatpush1.msra.mxu0 0.0
    %1746 = vmatprep.subr.mxu0 0.0
    %1747 = vmatpush1.msra.mxu0 0.0
    %1748 = vmatprep.subr.mxu0 0.0
    %1749 = vmatpush1.msra.mxu0 0.0
    %1750 = vmatprep.subr.mxu0 0.0
    %1751 = vmatpush1.msra.mxu0 0.0
    %1752 = vmatprep.subr.mxu0 0.0
    %1753 = vmatpush1.msra.mxu0 0.0
    %1754 = vmatprep.subr.mxu0 0.0
    %1755 = vmatpush1.msra.mxu0 0.0
    %1756 = vmatprep.subr.mxu0 0.0
    %1757 = vmatpush1.msra.mxu0 0.0
    %1758 = vmatprep.subr.mxu0 0.0
    %1759 = vmatpush1.msra.mxu0 0.0
    %1760 = vmatprep.subr.mxu0 0.0
    %1761 = vmatpush1.msra.mxu0 0.0
    %1762 = vmatprep.subr.mxu0 0.0
    %1763 = vmatpush1.msra.mxu0 0.0
    %1764 = vmatprep.subr.mxu0 0.0
    %1765 = vmatpush1.msra.mxu0 0.0
    %1766 = vmatprep.subr.mxu0 0.0
    %1767 = vmatpush1.msra.mxu0 0.0
    %1768 = vmatprep.subr.mxu0 0.0
    %1769 = vmatpush1.msra.mxu0 0.0
    %1770 = vmatprep.mubr.f32.mxu0 0.0
    %1771 = vmatmul.mubr.f32.gmra.mrb[0].mxu0 %v1633
    %v1772 = vpop.f32.mrb[0].mxu0
    %v1773 = vadd.f32 %v405, %v1772
    %v1774 = vpop.f32.mrb[0].mxu0
    %1775 = vdwg.mxu0
    %v1777 = vrot.slane %v1702, 1
    %v1779 = vadd.f32 %v269, %v1777
    %v1780 = vxor.u32 %v1779, 2147483648
    %v1781 = vmul.f32 %v1780, 1.442695
    %v1782 = vpow.pop %v1781
    %v1783 = vadd.f32 %v1782, 1.0
    %v1784 = vrcp.pop %v1783
    %v1785 = vmul.f32 1.0, %v1784
    %v1787 = vrot.slane %v1704, 1
    %v1789 = vadd.f32 %v271, %v1787
    %v1790 = vxor.u32 %v1789, 2147483648
    %v1791 = vmul.f32 %v1790, 1.442695
    %v1792 = vpow.pop %v1791
    %v1793 = vadd.f32 %v1792, 1.0
    %v1794 = vrcp.pop %v1793
    %v1795 = vmul.f32 1.0, %v1794
    %v1797 = vrot.slane %v1773, 1
    %v1799 = vmul.f32 %v1785, %v1797
    %v1800 = vadd.f32 %v340, %v1799
    %v1801 = vtanh.pop %v1800
    %v1802 = vsub.f32 1.0, %v1795
    %v1803 = vmul.f32 %v1802, %v1801
    %v1804 = vrot.slane %v1630, 7
    %v1806 = vmul.f32 %v1795, %v1804
    %v1807 = vadd.f32 %v1803, %v1806
    %1808 = vst [vmem:[#allocation3] sm:$0x80] %v1807
    %1809 = vst [vmem:[%s10 - $0x7] sm:$0x80] %v1807
    %v1810 = vld [vmem:[#allocation3] sm:$0xff]
    %v1811 = vld [vmem:[#allocation12] sm:$0xff]
    %v1812 = vld [vmem:[#allocation12 + $0x8] sm:$0xff]
    %v1813 = vld [vmem:[#allocation12 + $0x10] sm:$0xff]
    %v1814 = vld [vmem:[#allocation12 + $0x18] sm:$0xff]
    %v1815 = vld [vmem:[#allocation12 + $0x20] sm:$0xff]
    %v1816 = vld [vmem:[#allocation12 + $0x28] sm:$0xff]
    %v1817 = vld [vmem:[#allocation12 + $0x30] sm:$0xff]
    %v1818 = vld [vmem:[#allocation12 + $0x38] sm:$0xff]
    %v1819 = vld [vmem:[#allocation12 + $0x40] sm:$0xff]
    %v1820 = vld [vmem:[#allocation12 + $0x48] sm:$0xff]
    %v1821 = vld [vmem:[#allocation12 + $0x50] sm:$0xff]
    %v1822 = vld [vmem:[#allocation12 + $0x58] sm:$0xff]
    %v1823 = vld [vmem:[#allocation12 + $0x60] sm:$0xff]
    %v1824 = vld [vmem:[#allocation12 + $0x68] sm:$0xff]
    %v1825 = vld [vmem:[#allocation12 + $0x70] sm:$0xff]
    %v1826 = vld [vmem:[#allocation12 + $0x78] sm:$0xff]
    %v1827 = vld [vmem:[%s8] sm:$0x1]
    %v1829 = vlaneseq
    %v1830 = vshrl.u32 %v1829, 7
    %v1831 = vsub.s32 0, %v1830
    %v1832 = vrot.slane %v1827, %v1831
    %1834 = vmatprep.subr.mxu0 0.0
    %1835 = vmatpush1.msra.mxu0 %v1811
    %1836 = vmatprep.subr.mxu0 0.0
    %1837 = vmatpush1.msra.mxu0 %v1812
    %1838 = vmatprep.subr.mxu0 0.0
    %1839 = vmatpush1.msra.mxu0 %v1813
    %1840 = vmatprep.subr.mxu0 0.0
    %1841 = vmatpush1.msra.mxu0 %v1814
    %1842 = vmatprep.subr.mxu0 0.0
    %1843 = vmatpush1.msra.mxu0 %v1815
    %1844 = vmatprep.subr.mxu0 0.0
    %1845 = vmatpush1.msra.mxu0 %v1816
    %1846 = vmatprep.subr.mxu0 0.0
    %1847 = vmatpush1.msra.mxu0 %v1817
    %1848 = vmatprep.subr.mxu0 0.0
    %1849 = vmatpush1.msra.mxu0 %v1818
    %1850 = vmatprep.subr.mxu0 0.0
    %1851 = vmatpush1.msra.mxu0 %v1819
    %1852 = vmatprep.subr.mxu0 0.0
    %1853 = vmatpush1.msra.mxu0 %v1820
    %1854 = vmatprep.subr.mxu0 0.0
    %1855 = vmatpush1.msra.mxu0 %v1821
    %1856 = vmatprep.subr.mxu0 0.0
    %1857 = vmatpush1.msra.mxu0 %v1822
    %1858 = vmatprep.subr.mxu0 0.0
    %1859 = vmatpush1.msra.mxu0 %v1823
    %1860 = vmatprep.subr.mxu0 0.0
    %1861 = vmatpush1.msra.mxu0 %v1824
    %1862 = vmatprep.subr.mxu0 0.0
    %1863 = vmatpush1.msra.mxu0 %v1825
    %1864 = vmatprep.subr.mxu0 0.0
    %1865 = vmatpush1.msra.mxu0 %v1826
    %1866 = vmatprep.subr.mxu0 0.0
    %1867 = vmatpush1.msra.mxu0 0.0
    %1868 = vmatprep.subr.mxu0 0.0
    %1869 = vmatpush1.msra.mxu0 0.0
    %1870 = vmatprep.subr.mxu0 0.0
    %1871 = vmatpush1.msra.mxu0 0.0
    %1872 = vmatprep.subr.mxu0 0.0
    %1873 = vmatpush1.msra.mxu0 0.0
    %1874 = vmatprep.subr.mxu0 0.0
    %1875 = vmatpush1.msra.mxu0 0.0
    %1876 = vmatprep.subr.mxu0 0.0
    %1877 = vmatpush1.msra.mxu0 0.0
    %1878 = vmatprep.subr.mxu0 0.0
    %1879 = vmatpush1.msra.mxu0 0.0
    %1880 = vmatprep.subr.mxu0 0.0
    %1881 = vmatpush1.msra.mxu0 0.0
    %1882 = vmatprep.subr.mxu0 0.0
    %1883 = vmatpush1.msra.mxu0 0.0
    %1884 = vmatprep.subr.mxu0 0.0
    %1885 = vmatpush1.msra.mxu0 0.0
    %1886 = vmatprep.subr.mxu0 0.0
    %1887 = vmatpush1.msra.mxu0 0.0
    %1888 = vmatprep.subr.mxu0 0.0
    %1889 = vmatpush1.msra.mxu0 0.0
    %1890 = vmatprep.subr.mxu0 0.0
    %1891 = vmatpush1.msra.mxu0 0.0
    %1892 = vmatprep.subr.mxu0 0.0
    %1893 = vmatpush1.msra.mxu0 0.0
    %1894 = vmatprep.subr.mxu0 0.0
    %1895 = vmatpush1.msra.mxu0 0.0
    %1896 = vmatprep.subr.mxu0 0.0
    %1897 = vmatpush1.msra.mxu0 0.0
    %1898 = vmatprep.mubr.f32.mxu0 0.0
    %1899 = vmatmul.mubr.f32.gmra.mrb[0].mxu0 %v1810
    %v1900 = vpop.f32.mrb[0].mxu0
    %v1901 = vadd.f32 %v1832, %v1900
    %v1902 = vpop.f32.mrb[0].mxu0
    %1903 = vdwg.mxu0
    %1904 = vmax.xlane.f32.xlu0 %v1901
    %v1905 = vpop.xlane.xlu0 %1904
    %v1906 = vsub.f32 %v1901, %v1905
    %v1907 = vmul.f32 %v1906, 1.442695
    %v1908 = vpow.pop %v1907
    %1909 = vadd.xlane.f32.xlu0 %v1908
    %v1910 = vpop.xlane.xlu0 %1909
    %v1911 = vlog2.pop %v1910
    %v1912 = vmul.f32 %v1911, 0.6931472
    %v1913 = vadd.f32 %v1905, %v1912
    %v1914 = vsub.f32 %v1901, %v1913
    %1915 = vst [vmem:[#allocation14] sm:$0xff] %v1914
    // Predicated region
    $region58: #{decoder_gru_forward.1} parent=1 // pred_check
      _
    $region59: #{decoder_gru_forward.1} parent=1 // pred_check_branch
      %1917 = sbr.rel (0) target = $region61
    $region60: #{decoder_gru_forward.1} parent=1 // pred_region
      %s1919 = ssub.s32 128, 128
      %1920 = vsyncadd [#allocation6], %s1919
      %s1922 = sshll.u32 [#allocation14], 4
      %s1923 = int_to_ptr.vmem [resolvable:$true] %s1922
      %1925 = dma.vmem_to_hbm [thread:$0]  %s1923, 128, %s9, [#allocation6]
    $region61: #{decoder_gru_forward.1} parent=1 // pred_fallthru
      _
    // Predicated region
    $region62: #{decoder_gru_forward.1} parent=1 // pred_check
      _
    $region63: #{decoder_gru_forward.1} parent=1 // pred_check_branch
      %1927 = sbr.rel (0) target = $region65
    $region64: #{decoder_gru_forward.1} parent=1 // pred_region
      _
    $region65: #{decoder_gru_forward.1} parent=1 // pred_fallthru
      _
    // Predicated region
    $region66: #{decoder_gru_forward.1} parent=1 // pred_check
      _
    $region67: #{decoder_gru_forward.1} parent=1 // pred_check_branch
      %1929 = sbr.rel (0) target = $region69
    $region68: #{decoder_gru_forward.1} parent=1 // pred_region
      %1930 = dma.done [#allocation6], 128
    $region69: #{decoder_gru_forward.1} parent=1 // pred_fallthru
      _
    // Predicated region
    $region70: #{decoder_gru_forward.1} parent=1 // pred_check
      _
    $region71: #{decoder_gru_forward.1} parent=1 // pred_check_branch
      %1932 = sbr.rel (0) target = $region73
    $region72: #{decoder_gru_forward.1} parent=1 // pred_region
      _
    $region73: #{decoder_gru_forward.1} parent=1 // pred_fallthru
      _
    %1933 = vsyncpa [#allocation5], 1
    %1934 = vsyncpa [#allocation10], 1
    %1935 = vsyncpa [#allocation13], 1
    %1936 = vsyncpa [#allocation6], 1
    %1937 = vsyncpa [#allocation7], 1

</llo_original>
